<compile_context>
chip_gen: v6e
topology: v6e:2x2x1
jax: 0.10.0
libtpu: 0.0.40
codegen_flags: <defaults>
</compile_context>

<pallas_src>
import functools
import math

import jax
import jax.numpy as jnp
from jax import lax
from jax.experimental import pallas as pl
from jax.experimental.pallas import tpu as pltpu

NEG_SLOPE = 0.2      # nn.LeakyReLU(negative_slope=0.2)
NORM_EPS = 1e-12     # F.normalize default eps

LANE = 128
VMEM_LIMIT_BYTES = 48 * 1024 * 1024   # safe on v5e/v6e (128 MiB) and v7x (64 MiB)


def _round_up(x, m):
    return ((x + m - 1) // m) * m


# ----------------------------- Pallas kernels ------------------------------

def _prop_kernel(a_ref, x_ref, w_ref, b_ref, o_ref, acc_ref, *,
                 transpose_a, n_layers, d_pad):
    """Fused per-side propagation.

    Accumulates  P = A @ X  (or A^T @ X) over the k grid axis into a f32 VMEM
    scratch, then at the last k-step applies every layer:
        H_l = l2_normalize(leaky_relu(P @ W_l + b_l), axis=1)
    writing each H_l into its lane-dense 128-wide column slab of the output.
    """
    k = pl.program_id(1)

    @pl.when(k == 0)
    def _():
        acc_ref[...] = jnp.zeros_like(acc_ref)

    contract = ((0,), (0,)) if transpose_a else ((1,), (0,))
    acc_ref[...] += lax.dot_general(
        a_ref[...], x_ref[...],
        dimension_numbers=(contract, ((), ())),
        preferred_element_type=jnp.float32)

    @pl.when(k == pl.num_programs(1) - 1)
    def _():
        p = acc_ref[...]                                        # (row_tile, d_pad) f32
        for l in range(n_layers):                               # static unroll (tiny)
            h = jnp.dot(p, w_ref[l],
                        preferred_element_type=jnp.float32) + b_ref[l]
            h = jnp.where(h >= 0.0, h, NEG_SLOPE * h)           # LeakyReLU
            ssq = jnp.sum(h * h, axis=1, keepdims=True)         # row sum-of-squares
            # x / max(||x||, eps) == x * rsqrt(max(ssq, eps^2))  (rsqrt -> EUP)
            o_ref[:, l * d_pad:(l + 1) * d_pad] = (
                h * lax.rsqrt(jnp.maximum(ssq, NORM_EPS * NORM_EPS))
            ).astype(o_ref.dtype)


def _propagate_side(a_pad, x_pad, w_pad, b_pad, *,
                    row_tile, k_tile, transpose_a, n_layers):
    """One side of the bipartite propagation on padded operands.

    a_pad:  (U_pad, I_pad) bf16 adjacency (shared by both sides).
    x_pad:  (K_pad, D_pad) bf16 layer-0 embeddings of the *other* node type.
    w_pad:  (L, D_pad, D_pad) f32 stacked per-layer weights (zero-padded).
    b_pad:  (L, 1, D_pad) f32 stacked per-layer biases (zero-padded).
    Returns (rows_pad, L * D_pad) f32 (caller slices off the padding).
    """
    d_pad = x_pad.shape[1]

    if transpose_a:
        rows_pad = a_pad.shape[1]       # output rows = columns of A
        k_pad = a_pad.shape[0]
        a_spec = pl.BlockSpec((k_tile, row_tile), lambda i, k: (k, i))
    else:
        rows_pad = a_pad.shape[0]       # output rows = rows of A
        k_pad = a_pad.shape[1]
        a_spec = pl.BlockSpec((row_tile, k_tile), lambda i, k: (i, k))

    grid = (rows_pad // row_tile, k_pad // k_tile)

    return pl.pallas_call(
        functools.partial(_prop_kernel, transpose_a=transpose_a,
                          n_layers=n_layers, d_pad=d_pad),
        out_shape=jax.ShapeDtypeStruct((rows_pad, n_layers * d_pad), jnp.float32),
        grid=grid,
        in_specs=[
            a_spec,
            pl.BlockSpec((k_tile, d_pad), lambda i, k: (k, 0)),
            pl.BlockSpec((n_layers, d_pad, d_pad), lambda i, k: (0, 0, 0)),
            pl.BlockSpec((n_layers, 1, d_pad), lambda i, k: (0, 0, 0)),
        ],
        out_specs=pl.BlockSpec((row_tile, n_layers * d_pad), lambda i, k: (i, 0)),
        scratch_shapes=[pltpu.VMEM((row_tile, d_pad), jnp.float32)],
        compiler_params=pltpu.CompilerParams(
            dimension_semantics=("parallel", "arbitrary"),
            vmem_limit_bytes=VMEM_LIMIT_BYTES),
    )(a_pad, x_pad, w_pad, b_pad)


def _bpr_kernel(u_ref, p_ref, n_ref, mf_ref, reg_ref):
    u = u_ref[...]
    p = p_ref[...]
    n = n_ref[...]
    bsz = u.shape[0]
    pos = jnp.sum(u * p, axis=1, keepdims=True)        # (B, 1)
    neg = jnp.sum(u * n, axis=1, keepdims=True)        # (B, 1)
    diff = pos - neg
    # numerically stable logsigmoid(diff)
    logsig = jnp.minimum(diff, 0.0) - jnp.log(1.0 + jnp.exp(-jnp.abs(diff)))
    mf_ref[...] = -jnp.sum(logsig, axis=(0, 1), keepdims=True) * (1.0 / bsz)
    reg_ref[...] = (jnp.sum(u * u, keepdims=True)
                    + jnp.sum(p * p, keepdims=True)
                    + jnp.sum(n * n, keepdims=True)) * 0.5


def bpr_parts(u, p, n):
    """Returns (mf_loss, regularizer) each as a (1,1) float32 array."""
    return pl.pallas_call(
        _bpr_kernel,
        out_shape=(jax.ShapeDtypeStruct((1, 1), jnp.float32),
                   jax.ShapeDtypeStruct((1, 1), jnp.float32)),
        in_specs=[pl.BlockSpec(memory_space=pltpu.MemorySpace.VMEM)] * 3,
        out_specs=(pl.BlockSpec(memory_space=pltpu.MemorySpace.VMEM),
                   pl.BlockSpec(memory_space=pltpu.MemorySpace.VMEM)),
        compiler_params=pltpu.CompilerParams(
            vmem_limit_bytes=VMEM_LIMIT_BYTES),
    )(u, p, n)


# ------------------------------- model glue --------------------------------

def xavier_uniform(key, shape):
    """Matches torch.nn.init.xavier_uniform_ for 2-D tensors."""
    fan_out, fan_in = shape
    bound = math.sqrt(6.0 / (fan_in + fan_out))
    return jax.random.uniform(key, shape, jnp.float32, -bound, bound)


def init_params(key, n_users, n_items, dim, n_layers):
    keys = jax.random.split(key, 2 + 2 * n_layers)
    params = {
        "user_emb": xavier_uniform(keys[0], (n_users, dim)),
        "item_emb": xavier_uniform(keys[1], (n_items, dim)),
    }
    for l in range(n_layers):
        params[f"W_{l}"] = xavier_uniform(keys[2 + 2 * l], (dim, dim))
        params[f"b_{l}"] = xavier_uniform(keys[3 + 2 * l], (1, dim))
    return params


def make_norm_adj(key, n_users, n_items):
    """Row-normalized dense adjacency D^-1 A (== self.norm_inter_mat / DA)."""
    a = (jax.random.uniform(key, (n_users, n_items)) < 0.35).astype(jnp.float32)
    rowsum = jnp.sum(a, axis=1, keepdims=True)
    d_inv = jnp.where(rowsum > 0, 1.0 / rowsum, 0.0)   # inf -> 0
    return d_inv * a


def recommender_forward(params, DA, batch, *, decay, n_layers):
    id_user = params["user_emb"]            # (U, D) f32 -- layer-0 embeddings
    id_item = params["item_emb"]            # (I, D) f32
    n_users, dim = id_user.shape
    n_items = id_item.shape[0]

    # ---- tiling / padding plan (lane-dense 128-wide D, (8,128)-aligned tiles)
    d_pad = _round_up(dim, LANE)
    u_tile = min(512, _round_up(n_users, 8))
    i_tile = min(1024, _round_up(n_items, LANE))
    u_pad = _round_up(n_users, u_tile)
    i_pad = _round_up(n_items, i_tile)

    # adjacency + layer-0 embeddings: pad once, cast MXU operands to bf16.
    da_pad = jnp.pad(DA, ((0, u_pad - n_users), (0, i_pad - n_items))
                     ).astype(jnp.bfloat16)
    item_pad = jnp.pad(id_item, ((0, i_pad - n_items), (0, d_pad - dim))
                       ).astype(jnp.bfloat16)
    user_pad = jnp.pad(id_user, ((0, u_pad - n_users), (0, d_pad - dim))
                       ).astype(jnp.bfloat16)

    # stacked per-layer weights / biases (zero-padded, stay f32)
    w_pad = jnp.stack([jnp.pad(params[f"W_{l}"],
                               ((0, d_pad - dim), (0, d_pad - dim)))
                       for l in range(n_layers)], axis=0)        # (L, Dp, Dp)
    b_pad = jnp.stack([jnp.pad(params[f"b_{l}"], ((0, 0), (0, d_pad - dim)))
                       for l in range(n_layers)], axis=0)        # (L, 1, Dp)

    # One fused kernel per side: A@X accumulated once, all layers applied in
    # the epilogue.  (The PyTorch model uses layer-0 embeddings every layer.)
    user_out = _propagate_side(da_pad, item_pad, w_pad, b_pad,
                               row_tile=u_tile, k_tile=i_tile,
                               transpose_a=False, n_layers=n_layers)
    item_out = _propagate_side(da_pad, user_pad, w_pad, b_pad,
                               row_tile=i_tile, k_tile=u_tile,
                               transpose_a=True, n_layers=n_layers)

    total_embeddings = [jnp.concatenate([id_user, id_item], axis=0)]
    for l in range(n_layers):
        up = user_out[:n_users, l * d_pad:l * d_pad + dim]
        ip = item_out[:n_items, l * d_pad:l * d_pad + dim]
        total_embeddings.append(jnp.concatenate([up, ip], axis=0))

    total_embeddings = jnp.concatenate(total_embeddings, axis=1)
    user_emb = total_embeddings[:n_users, :]
    item_emb = total_embeddings[n_users:, :]

    # batch gather (JAX glue) + BPR loss pieces reduced inside a Pallas kernel
    u = user_emb[batch["batch_users"]]
    p = item_emb[batch["batch_pos"]]
    n = item_emb[batch["batch_neg"]]
    mf, reg = bpr_parts(u, p, n)
    bsz = u.shape[0]
    bpr_loss = mf[0, 0] + decay * reg[0, 0] / bsz
    return bpr_loss, user_emb, item_emb


def reference_forward(params, DA, batch, *, decay, n_layers):
    """Pure-JAX f32 reference (mirrors the PyTorch module)."""
    id_user = params["user_emb"]
    id_item = params["item_emb"]
    n_users = id_user.shape[0]
    total = [jnp.concatenate([id_user, id_item], axis=0)]
    for l in range(n_layers):
        W = params[f"W_{l}"]
        b = params[f"b_{l}"]
        up = jnp.dot(jnp.dot(DA, id_item), W) + b
        ip = jnp.dot(jnp.dot(DA.T, id_user), W) + b
        s = jnp.concatenate([up, ip], axis=0)
        s = jnp.where(s >= 0.0, s, NEG_SLOPE * s)
        nrm = jnp.sqrt(jnp.sum(s * s, axis=1, keepdims=True))
        total.append(s / jnp.maximum(nrm, NORM_EPS))
    total = jnp.concatenate(total, axis=1)
    user_emb = total[:n_users, :]
    item_emb = total[n_users:, :]
    u = user_emb[batch["batch_users"]]
    p = item_emb[batch["batch_pos"]]
    n = item_emb[batch["batch_neg"]]
    pos = jnp.sum(u * p, axis=1)
    neg = jnp.sum(u * n, axis=1)
    mf = -jnp.mean(jax.nn.log_sigmoid(pos - neg))
    reg = (jnp.sum(u * u) + jnp.sum(p * p) + jnp.sum(n * n)) / 2.0
    return mf + decay * reg / u.shape[0], user_emb, item_emb


# ---------------------------------- main ------------------------------------

if __name__ == "__main__":
    # small synthetic config (args.*): dim=32, n_layers=2, decay=1e-5,
    # drop_out=0.0, mess_drop_out=0.0
    n_users, n_items, dim, n_layers = 8, 16, 32, 2
    decay = 1e-5
    batch_size = 8

    key = jax.random.PRNGKey(0)
    k_param, k_adj, k_u, k_p, k_n = jax.random.split(key, 5)

    params = init_params(k_param, n_users, n_items, dim, n_layers)
    DA = make_norm_adj(k_adj, n_users, n_items)   # drop_rate=0 -> identity dropout

    batch = {
        "batch_users": jax.random.randint(k_u, (batch_size,), 0, n_users),
        "batch_pos":   jax.random.randint(k_p, (batch_size,), 0, n_items),
        "batch_neg":   jax.random.randint(k_n, (batch_size,), 0, n_items),
    }

    fwd = jax.jit(lambda pr, da, bt: recommender_forward(
        pr, da, bt, decay=decay, n_layers=n_layers))

    bpr_loss, user_emb, item_emb = fwd(params, DA, batch)
    jax.block_until_ready((bpr_loss, user_emb, item_emb))

    assert user_emb.shape == (n_users, dim * (n_layers + 1))
    assert item_emb.shape == (n_items, dim * (n_layers + 1))
    assert bpr_loss.shape == ()

    # correctness vs. pure-f32 JAX reference (bf16 MXU operands -> loose tol)
    ref_loss, ref_user, ref_item = reference_forward(
        params, DA, batch, decay=decay, n_layers=n_layers)
    assert bool(jnp.allclose(user_emb, ref_user, atol=3e-2, rtol=3e-2))
    assert bool(jnp.allclose(item_emb, ref_item, atol=3e-2, rtol=3e-2))
    assert bool(jnp.allclose(bpr_loss, ref_loss, atol=3e-2, rtol=3e-2))

    print("KERNEL_OK")
</pallas_src>

<mosaic_0001>
module attributes {stable_mosaic.version = 11 : i64} {
  func.func @_prop_kernel(%arg0: i32, %arg1: i32, %arg2: memref<8x128xbf16, #tpu.memory_space<vmem>>, %arg3: memref<128x128xbf16, #tpu.memory_space<vmem>>, %arg4: memref<2x128x128xf32, #tpu.memory_space<vmem>>, %arg5: memref<2x1x128xf32, #tpu.memory_space<vmem>>, %arg6: memref<8x256xf32, #tpu.memory_space<vmem>>, %arg7: memref<8x128xf32, #tpu.memory_space<vmem>>) attributes {dimension_semantics = [#tpu.dimension_semantics<parallel>, #tpu.dimension_semantics<arbitrary>], iteration_bounds = array<i64: 1, 1>, scalar_prefetch = 0 : i64, scratch_operands = 1 : i64, tpu.core_type = #tpu.core_type<tc>, window_params = [{transform_indices = @transform_0, window_bounds = array<i64: 8, 128>}, {transform_indices = @transform_1, window_bounds = array<i64: 128, 128>}, {pipeline_mode = #tpu.pipeline_mode<synchronous>, transform_indices = @transform_2, window_bounds = array<i64: 2, 128, 128>}, {pipeline_mode = #tpu.pipeline_mode<synchronous>, transform_indices = @transform_3, window_bounds = array<i64: 2, 1, 128>}, {transform_indices = @transform_4, window_bounds = array<i64: 8, 256>}]} {
    %c0_i32 = arith.constant 0 : i32
    %0 = arith.cmpi eq, %arg1, %c0_i32 : i32
    %1 = arith.extui %0 : i1 to i32
    %c0_i32_0 = arith.constant 0 : i32
    %2 = arith.cmpi ne, %1, %c0_i32_0 : i32
    scf.if %2 {
      %cst_10 = arith.constant 0.000000e+00 : f32
      %12 = vector.broadcast %cst_10 : f32 to vector<8x128xf32>
      %c0_11 = arith.constant 0 : index
      %c0_12 = arith.constant 0 : index
      %13 = vector.load %arg7[%c0_11, %c0_12] : memref<8x128xf32, #tpu.memory_space<vmem>>, vector<8x128xf32>
      tpu.vector_store %arg7[%c0_11, %c0_12], %12 {strides = array<i32>} : memref<8x128xf32, #tpu.memory_space<vmem>>, vector<8x128xf32>,
    } else {
    }
    %c0 = arith.constant 0 : index
    %c0_1 = arith.constant 0 : index
    %3 = vector.load %arg7[%c0, %c0_1] : memref<8x128xf32, #tpu.memory_space<vmem>>, vector<8x128xf32>
    %c0_2 = arith.constant 0 : index
    %c0_3 = arith.constant 0 : index
    %4 = vector.load %arg2[%c0_2, %c0_3] : memref<8x128xbf16, #tpu.memory_space<vmem>>, vector<8x128xbf16>
    %c0_4 = arith.constant 0 : index
    %c0_5 = arith.constant 0 : index
    %5 = vector.load %arg3[%c0_4, %c0_5] : memref<128x128xbf16, #tpu.memory_space<vmem>>, vector<128x128xbf16>
    %cst = arith.constant dense<0.000000e+00> : vector<8x128xf32>
    %6 = tpu.matmul %4, %5, %cst {dimension_numbers = #tpu.dot_dimension_numbers<[1], [0], [0], [1], [0, 0, 1, 1], [], []>} : vector<8x128xbf16>, vector<128x128xbf16>, vector<8x128xf32> -> vector<8x128xf32>
    %7 = arith.addf %3, %6 : vector<8x128xf32>
    %c0_6 = arith.constant 0 : index
    %c0_7 = arith.constant 0 : index
    %8 = vector.load %arg7[%c0_6, %c0_7] : memref<8x128xf32, #tpu.memory_space<vmem>>, vector<8x128xf32>
    tpu.vector_store %arg7[%c0_6, %c0_7], %7 {strides = array<i32>} : memref<8x128xf32, #tpu.memory_space<vmem>>, vector<8x128xf32>,
    %c0_i32_8 = arith.constant 0 : i32
    %9 = arith.cmpi eq, %arg1, %c0_i32_8 : i32
    %10 = arith.extui %9 : i1 to i32
    %c0_i32_9 = arith.constant 0 : i32
    %11 = arith.cmpi ne, %10, %c0_i32_9 : i32
    scf.if %11 {
      %c0_10 = arith.constant 0 : index
      %c0_11 = arith.constant 0 : index
      %12 = vector.load %arg7[%c0_10, %c0_11] : memref<8x128xf32, #tpu.memory_space<vmem>>, vector<8x128xf32>
      %c0_12 = arith.constant 0 : index
      %c0_13 = arith.constant 0 : index
      %c0_14 = arith.constant 0 : index
      %13 = vector.load %arg4[%c0_12, %c0_13, %c0_14] : memref<2x128x128xf32, #tpu.memory_space<vmem>>, vector<1x128x128xf32>
      %14 = vector.shape_cast %13 : vector<1x128x128xf32> to vector<128x128xf32>
      %cst_15 = arith.constant dense<0.000000e+00> : vector<8x128xf32>
      %15 = tpu.matmul %12, %14, %cst_15 {dimension_numbers = #tpu.dot_dimension_numbers<[1], [0], [0], [1], [0, 0, 1, 1], [], []>} : vector<8x128xf32>, vector<128x128xf32>, vector<8x128xf32> -> vector<8x128xf32>
      %c0_16 = arith.constant 0 : index
      %c0_17 = arith.constant 0 : index
      %c0_18 = arith.constant 0 : index
      %16 = vector.load %arg5[%c0_16, %c0_17, %c0_18] : memref<2x1x128xf32, #tpu.memory_space<vmem>>, vector<1x1x128xf32>
      %17 = vector.shape_cast %16 : vector<1x1x128xf32> to vector<1x128xf32>
      %18 = vector.broadcast %17 : vector<1x128xf32> to vector<8x128xf32>
      %19 = arith.addf %15, %18 : vector<8x128xf32>
      %cst_19 = arith.constant 0.000000e+00 : f32
      %20 = vector.broadcast %cst_19 : f32 to vector<8x128xf32>
      %21 = arith.cmpf oge, %19, %20 : vector<8x128xf32>
      %cst_20 = arith.constant 2.000000e-01 : f32
      %22 = vector.broadcast %cst_20 : f32 to vector<8x128xf32>
      %23 = arith.mulf %22, %19 : vector<8x128xf32>
      %24 = arith.select %21, %19, %23 : vector<8x128xi1>, vector<8x128xf32>
      %25 = arith.mulf %24, %24 : vector<8x128xf32>
      %cst_21 = arith.constant dense<0.000000e+00> : vector<8xf32>
      %26 = vector.multi_reduction <add>, %25, %cst_21 [1] : vector<8x128xf32> to vector<8xf32>
      %27 = vector.shape_cast %26 : vector<8xf32> to vector<8x1xf32>
      %cst_22 = arith.constant 1.000000e-24 : f32
      %28 = vector.broadcast %cst_22 : f32 to vector<8x1xf32>
      %29 = arith.maximumf %27, %28 : vector<8x1xf32>
      %30 = math.rsqrt %29 : vector<8x1xf32>
      %31 = vector.broadcast %30 : vector<8x1xf32> to vector<8x128xf32>
      %32 = arith.mulf %24, %31 : vector<8x128xf32>
      %c0_23 = arith.constant 0 : index
      %c0_24 = arith.constant 0 : index
      %33 = vector.load %arg6[%c0_23, %c0_24] : memref<8x256xf32, #tpu.memory_space<vmem>>, vector<8x128xf32>
      tpu.vector_store %arg6[%c0_23, %c0_24], %32 {strides = array<i32>} : memref<8x256xf32, #tpu.memory_space<vmem>>, vector<8x128xf32>,
      %c1 = arith.constant 1 : index
      %c0_25 = arith.constant 0 : index
      %c0_26 = arith.constant 0 : index
      %34 = vector.load %arg4[%c1, %c0_25, %c0_26] : memref<2x128x128xf32, #tpu.memory_space<vmem>>, vector<1x128x128xf32>
      %35 = vector.shape_cast %34 : vector<1x128x128xf32> to vector<128x128xf32>
      %cst_27 = arith.constant dense<0.000000e+00> : vector<8x128xf32>
      %36 = tpu.matmul %12, %35, %cst_27 {dimension_numbers = #tpu.dot_dimension_numbers<[1], [0], [0], [1], [0, 0, 1, 1], [], []>} : vector<8x128xf32>, vector<128x128xf32>, vector<8x128xf32> -> vector<8x128xf32>
      %c1_28 = arith.constant 1 : index
      %c0_29 = arith.constant 0 : index
      %c0_30 = arith.constant 0 : index
      %37 = vector.load %arg5[%c1_28, %c0_29, %c0_30] : memref<2x1x128xf32, #tpu.memory_space<vmem>>, vector<1x1x128xf32>
      %38 = vector.shape_cast %37 : vector<1x1x128xf32> to vector<1x128xf32>
      %39 = vector.broadcast %38 : vector<1x128xf32> to vector<8x128xf32>
      %40 = arith.addf %36, %39 : vector<8x128xf32>
      %cst_31 = arith.constant 0.000000e+00 : f32
      %41 = vector.broadcast %cst_31 : f32 to vector<8x128xf32>
      %42 = arith.cmpf oge, %40, %41 : vector<8x128xf32>
      %cst_32 = arith.constant 2.000000e-01 : f32
      %43 = vector.broadcast %cst_32 : f32 to vector<8x128xf32>
      %44 = arith.mulf %43, %40 : vector<8x128xf32>
      %45 = arith.select %42, %40, %44 : vector<8x128xi1>, vector<8x128xf32>
      %46 = arith.mulf %45, %45 : vector<8x128xf32>
      %cst_33 = arith.constant dense<0.000000e+00> : vector<8xf32>
      %47 = vector.multi_reduction <add>, %46, %cst_33 [1] : vector<8x128xf32> to vector<8xf32>
      %48 = vector.shape_cast %47 : vector<8xf32> to vector<8x1xf32>
      %cst_34 = arith.constant 1.000000e-24 : f32
      %49 = vector.broadcast %cst_34 : f32 to vector<8x1xf32>
      %50 = arith.maximumf %48, %49 : vector<8x1xf32>
      %51 = math.rsqrt %50 : vector<8x1xf32>
      %52 = vector.broadcast %51 : vector<8x1xf32> to vector<8x128xf32>
      %53 = arith.mulf %45, %52 : vector<8x128xf32>
      %c0_35 = arith.constant 0 : index
      %c128 = arith.constant 128 : index
      %54 = vector.load %arg6[%c0_35, %c128] : memref<8x256xf32, #tpu.memory_space<vmem>>, vector<8x128xf32>
      tpu.vector_store %arg6[%c0_35, %c128], %53 {strides = array<i32>} : memref<8x256xf32, #tpu.memory_space<vmem>>, vector<8x128xf32>,
    } else {
    }
    return
  }
  func.func @transform_0(%arg0: i32, %arg1: i32) -> (i32, i32) {
    %c0_i32 = arith.constant 0 : i32
    return %arg0, %arg1 : i32, i32
  }
  func.func @transform_1(%arg0: i32, %arg1: i32) -> (i32, i32) {
    %c0_i32 = arith.constant 0 : i32
    %c0_i32_0 = arith.constant 0 : i32
    return %arg1, %c0_i32 : i32, i32
  }
  func.func @transform_2(%arg0: i32, %arg1: i32) -> (i32, i32, i32) {
    %c0_i32 = arith.constant 0 : i32
    %c0_i32_0 = arith.constant 0 : i32
    %c0_i32_1 = arith.constant 0 : i32
    %c0_i32_2 = arith.constant 0 : i32
    return %c0_i32, %c0_i32_0, %c0_i32_1 : i32, i32, i32
  }
  func.func @transform_3(%arg0: i32, %arg1: i32) -> (i32, i32, i32) {
    %c0_i32 = arith.constant 0 : i32
    %c0_i32_0 = arith.constant 0 : i32
    %c0_i32_1 = arith.constant 0 : i32
    %c0_i32_2 = arith.constant 0 : i32
    return %c0_i32, %c0_i32_0, %c0_i32_1 : i32, i32, i32
  }
  func.func @transform_4(%arg0: i32, %arg1: i32) -> (i32, i32) {
    %c0_i32 = arith.constant 0 : i32
    %c0_i32_0 = arith.constant 0 : i32
    return %arg0, %c0_i32 : i32, i32
  }
}

module attributes {stable_mosaic.version = 11 : i64} {
  func.func @_bpr_kernel(%arg0: memref<8x96xf32, #tpu.memory_space<vmem>>, %arg1: memref<8x96xf32, #tpu.memory_space<vmem>>, %arg2: memref<8x96xf32, #tpu.memory_space<vmem>>, %arg3: memref<1x1xf32, #tpu.memory_space<vmem>>, %arg4: memref<1x1xf32, #tpu.memory_space<vmem>>) attributes {dimension_semantics = [], scalar_prefetch = 0 : i64, scratch_operands = 0 : i64, tpu.core_type = #tpu.core_type<tc>} {
    %c0 = arith.constant 0 : index
    %c0_0 = arith.constant 0 : index
    %0 = vector.load %arg0[%c0, %c0_0] : memref<8x96xf32, #tpu.memory_space<vmem>>, vector<8x96xf32>
    %c0_1 = arith.constant 0 : index
    %c0_2 = arith.constant 0 : index
    %1 = vector.load %arg1[%c0_1, %c0_2] : memref<8x96xf32, #tpu.memory_space<vmem>>, vector<8x96xf32>
    %c0_3 = arith.constant 0 : index
    %c0_4 = arith.constant 0 : index
    %2 = vector.load %arg2[%c0_3, %c0_4] : memref<8x96xf32, #tpu.memory_space<vmem>>, vector<8x96xf32>
    %3 = arith.mulf %0, %1 : vector<8x96xf32>
    %cst = arith.constant dense<0.000000e+00> : vector<8xf32>
    %4 = vector.multi_reduction <add>, %3, %cst [1] : vector<8x96xf32> to vector<8xf32>
    %5 = vector.shape_cast %4 : vector<8xf32> to vector<8x1xf32>
    %6 = arith.mulf %0, %2 : vector<8x96xf32>
    %cst_5 = arith.constant dense<0.000000e+00> : vector<8xf32>
    %7 = vector.multi_reduction <add>, %6, %cst_5 [1] : vector<8x96xf32> to vector<8xf32>
    %8 = vector.shape_cast %7 : vector<8xf32> to vector<8x1xf32>
    %9 = arith.subf %5, %8 : vector<8x1xf32>
    %cst_6 = arith.constant 0.000000e+00 : f32
    %10 = vector.broadcast %cst_6 : f32 to vector<8x1xf32>
    %11 = arith.minimumf %9, %10 : vector<8x1xf32>
    %12 = math.absf %9 : vector<8x1xf32>
    %cst_7 = arith.constant 0.000000e+00 : f32
    %13 = vector.broadcast %cst_7 : f32 to vector<8x1xf32>
    %14 = arith.subf %13, %12 : vector<8x1xf32>
    %15 = math.exp %14 : vector<8x1xf32>
    %cst_8 = arith.constant 1.000000e+00 : f32
    %16 = vector.broadcast %cst_8 : f32 to vector<8x1xf32>
    %17 = arith.addf %16, %15 : vector<8x1xf32>
    %18 = math.log %17 : vector<8x1xf32>
    %19 = arith.subf %11, %18 : vector<8x1xf32>
    %20 = vector.shape_cast %19 : vector<8x1xf32> to vector<1x8x1xf32>
    %cst_9 = arith.constant dense<0.000000e+00> : vector<1xf32>
    %21 = vector.multi_reduction <add>, %20, %cst_9 [1, 2] : vector<1x8x1xf32> to vector<1xf32>
    %22 = vector.shape_cast %21 : vector<1xf32> to vector<1x1x1xf32>
    %23 = vector.extract %22[0, 0, 0] : f32 from vector<1x1x1xf32>
    %24 = vector.broadcast %23 : f32 to vector<1x1xf32>
    %cst_10 = arith.constant 0.000000e+00 : f32
    %25 = vector.broadcast %cst_10 : f32 to vector<1x1xf32>
    %26 = arith.subf %25, %24 : vector<1x1xf32>
    %cst_11 = arith.constant 1.250000e-01 : f32
    %27 = vector.broadcast %cst_11 : f32 to vector<1x1xf32>
    %28 = arith.mulf %26, %27 : vector<1x1xf32>
    %c0_12 = arith.constant 0 : index
    %c0_13 = arith.constant 0 : index
    %29 = vector.load %arg3[%c0_12, %c0_13] : memref<1x1xf32, #tpu.memory_space<vmem>>, vector<1x1xf32>
    tpu.vector_store %arg3[%c0_12, %c0_13], %28 {strides = array<i32>} : memref<1x1xf32, #tpu.memory_space<vmem>>, vector<1x1xf32>,
    %30 = arith.mulf %0, %0 : vector<8x96xf32>
    %31 = vector.shape_cast %30 : vector<8x96xf32> to vector<1x8x96xf32>
    %cst_14 = arith.constant dense<0.000000e+00> : vector<1xf32>
    %32 = vector.multi_reduction <add>, %31, %cst_14 [1, 2] : vector<1x8x96xf32> to vector<1xf32>
    %33 = vector.shape_cast %32 : vector<1xf32> to vector<1x1x1xf32>
    %34 = vector.extract %33[0, 0, 0] : f32 from vector<1x1x1xf32>
    %35 = vector.broadcast %34 : f32 to vector<1x1xf32>
    %36 = arith.mulf %1, %1 : vector<8x96xf32>
    %37 = vector.shape_cast %36 : vector<8x96xf32> to vector<1x8x96xf32>
    %cst_15 = arith.constant dense<0.000000e+00> : vector<1xf32>
    %38 = vector.multi_reduction <add>, %37, %cst_15 [1, 2] : vector<1x8x96xf32> to vector<1xf32>
    %39 = vector.shape_cast %38 : vector<1xf32> to vector<1x1x1xf32>
    %40 = vector.extract %39[0, 0, 0] : f32 from vector<1x1x1xf32>
    %41 = vector.broadcast %40 : f32 to vector<1x1xf32>
    %42 = arith.addf %35, %41 : vector<1x1xf32>
    %43 = arith.mulf %2, %2 : vector<8x96xf32>
    %44 = vector.shape_cast %43 : vector<8x96xf32> to vector<1x8x96xf32>
    %cst_16 = arith.constant dense<0.000000e+00> : vector<1xf32>
    %45 = vector.multi_reduction <add>, %44, %cst_16 [1, 2] : vector<1x8x96xf32> to vector<1xf32>
    %46 = vector.shape_cast %45 : vector<1xf32> to vector<1x1x1xf32>
    %47 = vector.extract %46[0, 0, 0] : f32 from vector<1x1x1xf32>
    %48 = vector.broadcast %47 : f32 to vector<1x1xf32>
    %49 = arith.addf %42, %48 : vector<1x1xf32>
    %cst_17 = arith.constant 5.000000e-01 : f32
    %50 = vector.broadcast %cst_17 : f32 to vector<1x1xf32>
    %51 = arith.mulf %49, %50 : vector<1x1xf32>
    %c0_18 = arith.constant 0 : index
    %c0_19 = arith.constant 0 : index
    %52 = vector.load %arg4[%c0_18, %c0_19] : memref<1x1xf32, #tpu.memory_space<vmem>>, vector<1x1xf32>
    tpu.vector_store %arg4[%c0_18, %c0_19], %51 {strides = array<i32>} : memref<1x1xf32, #tpu.memory_space<vmem>>, vector<1x1xf32>,
    return
  }
}

module attributes {stable_mosaic.version = 11 : i64} {
  func.func @_prop_kernel(%arg0: i32, %arg1: i32, %arg2: memref<8x128xbf16, #tpu.memory_space<vmem>>, %arg3: memref<8x128xbf16, #tpu.memory_space<vmem>>, %arg4: memref<2x128x128xf32, #tpu.memory_space<vmem>>, %arg5: memref<2x1x128xf32, #tpu.memory_space<vmem>>, %arg6: memref<128x256xf32, #tpu.memory_space<vmem>>, %arg7: memref<128x128xf32, #tpu.memory_space<vmem>>) attributes {dimension_semantics = [#tpu.dimension_semantics<parallel>, #tpu.dimension_semantics<arbitrary>], iteration_bounds = array<i64: 1, 1>, scalar_prefetch = 0 : i64, scratch_operands = 1 : i64, tpu.core_type = #tpu.core_type<tc>, window_params = [{transform_indices = @transform_0, window_bounds = array<i64: 8, 128>}, {transform_indices = @transform_1, window_bounds = array<i64: 8, 128>}, {pipeline_mode = #tpu.pipeline_mode<synchronous>, transform_indices = @transform_2, window_bounds = array<i64: 2, 128, 128>}, {pipeline_mode = #tpu.pipeline_mode<synchronous>, transform_indices = @transform_3, window_bounds = array<i64: 2, 1, 128>}, {transform_indices = @transform_4, window_bounds = array<i64: 128, 256>}]} {
    %c0_i32 = arith.constant 0 : i32
    %0 = arith.cmpi eq, %arg1, %c0_i32 : i32
    %1 = arith.extui %0 : i1 to i32
    %c0_i32_0 = arith.constant 0 : i32
    %2 = arith.cmpi ne, %1, %c0_i32_0 : i32
    scf.if %2 {
      %cst_10 = arith.constant 0.000000e+00 : f32
      %12 = vector.broadcast %cst_10 : f32 to vector<128x128xf32>
      %c0_11 = arith.constant 0 : index
      %c0_12 = arith.constant 0 : index
      %13 = vector.load %arg7[%c0_11, %c0_12] : memref<128x128xf32, #tpu.memory_space<vmem>>, vector<128x128xf32>
      tpu.vector_store %arg7[%c0_11, %c0_12], %12 {strides = array<i32>} : memref<128x128xf32, #tpu.memory_space<vmem>>, vector<128x128xf32>,
    } else {
    }
    %c0 = arith.constant 0 : index
    %c0_1 = arith.constant 0 : index
    %3 = vector.load %arg7[%c0, %c0_1] : memref<128x128xf32, #tpu.memory_space<vmem>>, vector<128x128xf32>
    %c0_2 = arith.constant 0 : index
    %c0_3 = arith.constant 0 : index
    %4 = vector.load %arg2[%c0_2, %c0_3] : memref<8x128xbf16, #tpu.memory_space<vmem>>, vector<8x128xbf16>
    %c0_4 = arith.constant 0 : index
    %c0_5 = arith.constant 0 : index
    %5 = vector.load %arg3[%c0_4, %c0_5] : memref<8x128xbf16, #tpu.memory_space<vmem>>, vector<8x128xbf16>
    %cst = arith.constant dense<0.000000e+00> : vector<128x128xf32>
    %6 = tpu.matmul %4, %5, %cst {dimension_numbers = #tpu.dot_dimension_numbers<[0], [0], [1], [1], [0, 1, 1, 1], [], []>} : vector<8x128xbf16>, vector<8x128xbf16>, vector<128x128xf32> -> vector<128x128xf32>
    %7 = arith.addf %3, %6 : vector<128x128xf32>
    %c0_6 = arith.constant 0 : index
    %c0_7 = arith.constant 0 : index
    %8 = vector.load %arg7[%c0_6, %c0_7] : memref<128x128xf32, #tpu.memory_space<vmem>>, vector<128x128xf32>
    tpu.vector_store %arg7[%c0_6, %c0_7], %7 {strides = array<i32>} : memref<128x128xf32, #tpu.memory_space<vmem>>, vector<128x128xf32>,
    %c0_i32_8 = arith.constant 0 : i32
    %9 = arith.cmpi eq, %arg1, %c0_i32_8 : i32
    %10 = arith.extui %9 : i1 to i32
    %c0_i32_9 = arith.constant 0 : i32
    %11 = arith.cmpi ne, %10, %c0_i32_9 : i32
    scf.if %11 {
      %c0_10 = arith.constant 0 : index
      %c0_11 = arith.constant 0 : index
      %12 = vector.load %arg7[%c0_10, %c0_11] : memref<128x128xf32, #tpu.memory_space<vmem>>, vector<128x128xf32>
      %c0_12 = arith.constant 0 : index
      %c0_13 = arith.constant 0 : index
      %c0_14 = arith.constant 0 : index
      %13 = vector.load %arg4[%c0_12, %c0_13, %c0_14] : memref<2x128x128xf32, #tpu.memory_space<vmem>>, vector<1x128x128xf32>
      %14 = vector.shape_cast %13 : vector<1x128x128xf32> to vector<128x128xf32>
      %cst_15 = arith.constant dense<0.000000e+00> : vector<128x128xf32>
      %15 = tpu.matmul %12, %14, %cst_15 {dimension_numbers = #tpu.dot_dimension_numbers<[1], [0], [0], [1], [0, 0, 1, 1], [], []>} : vector<128x128xf32>, vector<128x128xf32>, vector<128x128xf32> -> vector<128x128xf32>
      %c0_16 = arith.constant 0 : index
      %c0_17 = arith.constant 0 : index
      %c0_18 = arith.constant 0 : index
      %16 = vector.load %arg5[%c0_16, %c0_17, %c0_18] : memref<2x1x128xf32, #tpu.memory_space<vmem>>, vector<1x1x128xf32>
      %17 = vector.shape_cast %16 : vector<1x1x128xf32> to vector<1x128xf32>
      %18 = vector.broadcast %17 : vector<1x128xf32> to vector<128x128xf32>
      %19 = arith.addf %15, %18 : vector<128x128xf32>
      %cst_19 = arith.constant 0.000000e+00 : f32
      %20 = vector.broadcast %cst_19 : f32 to vector<128x128xf32>
      %21 = arith.cmpf oge, %19, %20 : vector<128x128xf32>
      %cst_20 = arith.constant 2.000000e-01 : f32
      %22 = vector.broadcast %cst_20 : f32 to vector<128x128xf32>
      %23 = arith.mulf %22, %19 : vector<128x128xf32>
      %24 = arith.select %21, %19, %23 : vector<128x128xi1>, vector<128x128xf32>
      %25 = arith.mulf %24, %24 : vector<128x128xf32>
      %cst_21 = arith.constant dense<0.000000e+00> : vector<128xf32>
      %26 = vector.multi_reduction <add>, %25, %cst_21 [1] : vector<128x128xf32> to vector<128xf32>
      %27 = vector.shape_cast %26 : vector<128xf32> to vector<128x1xf32>
      %cst_22 = arith.constant 1.000000e-24 : f32
      %28 = vector.broadcast %cst_22 : f32 to vector<128x1xf32>
      %29 = arith.maximumf %27, %28 : vector<128x1xf32>
      %30 = math.rsqrt %29 : vector<128x1xf32>
      %31 = vector.broadcast %30 : vector<128x1xf32> to vector<128x128xf32>
      %32 = arith.mulf %24, %31 : vector<128x128xf32>
      %c0_23 = arith.constant 0 : index
      %c0_24 = arith.constant 0 : index
      %33 = vector.load %arg6[%c0_23, %c0_24] : memref<128x256xf32, #tpu.memory_space<vmem>>, vector<128x128xf32>
      tpu.vector_store %arg6[%c0_23, %c0_24], %32 {strides = array<i32>} : memref<128x256xf32, #tpu.memory_space<vmem>>, vector<128x128xf32>,
      %c1 = arith.constant 1 : index
      %c0_25 = arith.constant 0 : index
      %c0_26 = arith.constant 0 : index
      %34 = vector.load %arg4[%c1, %c0_25, %c0_26] : memref<2x128x128xf32, #tpu.memory_space<vmem>>, vector<1x128x128xf32>
      %35 = vector.shape_cast %34 : vector<1x128x128xf32> to vector<128x128xf32>
      %cst_27 = arith.constant dense<0.000000e+00> : vector<128x128xf32>
      %36 = tpu.matmul %12, %35, %cst_27 {dimension_numbers = #tpu.dot_dimension_numbers<[1], [0], [0], [1], [0, 0, 1, 1], [], []>} : vector<128x128xf32>, vector<128x128xf32>, vector<128x128xf32> -> vector<128x128xf32>
      %c1_28 = arith.constant 1 : index
      %c0_29 = arith.constant 0 : index
      %c0_30 = arith.constant 0 : index
      %37 = vector.load %arg5[%c1_28, %c0_29, %c0_30] : memref<2x1x128xf32, #tpu.memory_space<vmem>>, vector<1x1x128xf32>
      %38 = vector.shape_cast %37 : vector<1x1x128xf32> to vector<1x128xf32>
      %39 = vector.broadcast %38 : vector<1x128xf32> to vector<128x128xf32>
      %40 = arith.addf %36, %39 : vector<128x128xf32>
      %cst_31 = arith.constant 0.000000e+00 : f32
      %41 = vector.broadcast %cst_31 : f32 to vector<128x128xf32>
      %42 = arith.cmpf oge, %40, %41 : vector<128x128xf32>
      %cst_32 = arith.constant 2.000000e-01 : f32
      %43 = vector.broadcast %cst_32 : f32 to vector<128x128xf32>
      %44 = arith.mulf %43, %40 : vector<128x128xf32>
      %45 = arith.select %42, %40, %44 : vector<128x128xi1>, vector<128x128xf32>
      %46 = arith.mulf %45, %45 : vector<128x128xf32>
      %cst_33 = arith.constant dense<0.000000e+00> : vector<128xf32>
      %47 = vector.multi_reduction <add>, %46, %cst_33 [1] : vector<128x128xf32> to vector<128xf32>
      %48 = vector.shape_cast %47 : vector<128xf32> to vector<128x1xf32>
      %cst_34 = arith.constant 1.000000e-24 : f32
      %49 = vector.broadcast %cst_34 : f32 to vector<128x1xf32>
      %50 = arith.maximumf %48, %49 : vector<128x1xf32>
      %51 = math.rsqrt %50 : vector<128x1xf32>
      %52 = vector.broadcast %51 : vector<128x1xf32> to vector<128x128xf32>
      %53 = arith.mulf %45, %52 : vector<128x128xf32>
      %c0_35 = arith.constant 0 : index
      %c128 = arith.constant 128 : index
      %54 = vector.load %arg6[%c0_35, %c128] : memref<128x256xf32, #tpu.memory_space<vmem>>, vector<128x128xf32>
      tpu.vector_store %arg6[%c0_35, %c128], %53 {strides = array<i32>} : memref<128x256xf32, #tpu.memory_space<vmem>>, vector<128x128xf32>,
    } else {
    }
    return
  }
  func.func @transform_0(%arg0: i32, %arg1: i32) -> (i32, i32) {
    %c0_i32 = arith.constant 0 : i32
    return %arg1, %arg0 : i32, i32
  }
  func.func @transform_1(%arg0: i32, %arg1: i32) -> (i32, i32) {
    %c0_i32 = arith.constant 0 : i32
    %c0_i32_0 = arith.constant 0 : i32
    return %arg1, %c0_i32 : i32, i32
  }
  func.func @transform_2(%arg0: i32, %arg1: i32) -> (i32, i32, i32) {
    %c0_i32 = arith.constant 0 : i32
    %c0_i32_0 = arith.constant 0 : i32
    %c0_i32_1 = arith.constant 0 : i32
    %c0_i32_2 = arith.constant 0 : i32
    return %c0_i32, %c0_i32_0, %c0_i32_1 : i32, i32, i32
  }
  func.func @transform_3(%arg0: i32, %arg1: i32) -> (i32, i32, i32) {
    %c0_i32 = arith.constant 0 : i32
    %c0_i32_0 = arith.constant 0 : i32
    %c0_i32_1 = arith.constant 0 : i32
    %c0_i32_2 = arith.constant 0 : i32
    return %c0_i32, %c0_i32_0, %c0_i32_1 : i32, i32, i32
  }
  func.func @transform_4(%arg0: i32, %arg1: i32) -> (i32, i32) {
    %c0_i32 = arith.constant 0 : i32
    %c0_i32_0 = arith.constant 0 : i32
    return %arg0, %c0_i32 : i32, i32
  }
}

</mosaic_0001>

<llo_original>
// kernel: _lambda_.5
$region0: #{_lambda_.5}
  #allocation0 [shape = 'u32[]', space=smem, size = 0x4, offset = 0x4, fixed_abs, tag = 'smem constant byte address 0x4 - core index']
  #allocation1 [shape = 'u32[144,128]{1,0:T(1,128)}', space=vmem, size = 0x12000, scoped, tag = 'internal scratch']
  %s0 = inlined_call_operand.vmem [shape: f32[8,96], index: 0, kind: input, shape index: {}]
  %s1 = inlined_call_operand.vmem [shape: f32[8,96], index: 1, kind: input, shape index: {}]
  %s2 = inlined_call_operand.vmem [shape: f32[8,96], index: 2, kind: input, shape index: {}]
  %s3 = inlined_call_operand.hbm [shape: f32[1,1], index: 3, kind: output, shape index: {0}]
  %s4 = inlined_call_operand.hbm [shape: f32[1,1], index: 4, kind: output, shape index: {1}]
  %5 = xla_tuple %s3, %s4
  %s6 = sld [smem:[#allocation0]]
  $region30: #{_lambda_.5} parent=0
    _
  %s8 = ssub.s32 1, %s6
  %s9 = scalar_select 0, %s8, %s6
  $region1: #{_lambda_.5} parent=0
    #allocation2 [shape = 'u8[512]{0}', space=vmem, size = 0x400, scoped, tag = 'output window, operand 0, single buffered']
    #allocation3 [shape = 's32[1]{0}', space=sflag, size = 0x4, scoped, tag = 'scoped memory for _lambda_.5']
    #allocation4 [shape = 'u8[512]{0}', space=vmem, size = 0x400, scoped, tag = 'output window, operand 1, single buffered']
    #allocation5 [shape = 's32[1]{0}', space=sflag, size = 0x4, scoped, tag = 'scoped memory for _lambda_.5']
    %10 = vsyncpa [#allocation3], 0
    %11 = vsyncpa [#allocation5], 0
    // Predicated region
    $region2: #{_lambda_.5} parent=1 // pred_check
      _
    $region3: #{_lambda_.5} parent=1 // pred_check_branch
      %13 = sbr.rel (0) target = $region5
    $region4: #{_lambda_.5} parent=1 // pred_region
      _
    $region5: #{_lambda_.5} parent=1 // pred_fallthru
      _
    // Predicated region
    $region6: #{_lambda_.5} parent=1 // pred_check
      _
    $region7: #{_lambda_.5} parent=1 // pred_check_branch
      %15 = sbr.rel (0) target = $region9
    $region8: #{_lambda_.5} parent=1 // pred_region
      _
    $region9: #{_lambda_.5} parent=1 // pred_fallthru
      _
    // Predicated region
    $region10: #{_lambda_.5} parent=1 // pred_check
      _
    $region11: #{_lambda_.5} parent=1 // pred_check_branch
      %17 = sbr.rel (0) target = $region13
    $region12: #{_lambda_.5} parent=1 // pred_region
      _
    $region13: #{_lambda_.5} parent=1 // pred_fallthru
      _
    %v18 = vld [vmem:[%s0] sm:$0xff]
    %v19 = vld [vmem:[%s1] sm:$0xff]
    %v20 = vld [vmem:[%s2] sm:$0xff]
    %v21 = vmul.f32 %v18, %v19
    %vm22 = vcmask 785408
    %v23 = vsel %vm22, %v21, 0.0
    %24 = vadd.xlane.f32.xlu0 %v23
    %v25 = vpop.xlane.xlu0 %24
    %v26 = vmul.f32 %v18, %v20
    %v27 = vsel %vm22, %v26, 0.0
    %28 = vadd.xlane.f32.xlu0 %v27
    %v29 = vpop.xlane.xlu0 %28
    %v30 = vsub.f32 %v25, %v29
    %v31 = vmin.f32 %v30, 0.0
    %v32 = vand.u32 2147483647, %v30
    %v33 = vsub.f32 0.0, %v32
    %v34 = vmul.f32 %v33, 1.442695
    %v35 = vpow.pop %v34
    %v36 = vadd.f32 %v35, 1.0
    %v37 = vlog2.pop %v36
    %v38 = vmul.f32 %v37, 0.6931472
    %v39 = vsub.f32 %v31, %v38
    %vm40 = vcmask 7168
    %v41 = vsel %vm40, %v39, 0.0
    %42 = vadd.xlane.f32.xlu0 %v41
    %v43 = vpop.xlane.xlu0 %42
    %v44 = vrot.slane %v43, 4
    %v45 = vadd.f32 %v43, %v44
    %v46 = vrot.slane %v45, 2
    %v47 = vadd.f32 %v45, %v46
    %v48 = vrot.slane %v47, 1
    %v49 = vadd.f32 %v47, %v48
    %s50 = vtos %v49
    %v51 = vstv %s50
    %v52 = vsub.f32 0.0, %v51
    %v53 = vmul.f32 %v52, 0.125
    %vm54 = vcmask 0
    %55 = vst.msk [vmem:[#allocation2] sm:$0x1] %vm54, %v53
    %v56 = vmul.f32 %v18, %v18
    %v57 = vsel %vm22, %v56, 0.0
    %58 = vadd.xlane.f32.xlu0 %v57
    %v59 = vpop.xlane.xlu0 %58
    %v60 = vrot.slane %v59, 4
    %v61 = vadd.f32 %v59, %v60
    %v62 = vrot.slane %v61, 2
    %v63 = vadd.f32 %v61, %v62
    %v64 = vrot.slane %v63, 1
    %v65 = vadd.f32 %v63, %v64
    %s66 = vtos %v65
    %v67 = vstv %s66
    %v68 = vmul.f32 %v19, %v19
    %v69 = vsel %vm22, %v68, 0.0
    %70 = vadd.xlane.f32.xlu0 %v69
    %v71 = vpop.xlane.xlu0 %70
    %v72 = vrot.slane %v71, 4
    %v73 = vadd.f32 %v71, %v72
    %v74 = vrot.slane %v73, 2
    %v75 = vadd.f32 %v73, %v74
    %v76 = vrot.slane %v75, 1
    %v77 = vadd.f32 %v75, %v76
    %s78 = vtos %v77
    %v79 = vstv %s78
    %v80 = vadd.f32 %v67, %v79
    %v81 = vmul.f32 %v20, %v20
    %v82 = vsel %vm22, %v81, 0.0
    %83 = vadd.xlane.f32.xlu0 %v82
    %v84 = vpop.xlane.xlu0 %83
    %v85 = vrot.slane %v84, 4
    %v86 = vadd.f32 %v84, %v85
    %v87 = vrot.slane %v86, 2
    %v88 = vadd.f32 %v86, %v87
    %v89 = vrot.slane %v88, 1
    %v90 = vadd.f32 %v88, %v89
    %s91 = vtos %v90
    %v92 = vstv %s91
    %v93 = vadd.f32 %v80, %v92
    %v94 = vmul.f32 %v93, 0.5
    %95 = vst.msk [vmem:[#allocation4] sm:$0x1] %vm54, %v94
    // Predicated region
    $region14: #{_lambda_.5} parent=1 // pred_check
      _
    $region15: #{_lambda_.5} parent=1 // pred_check_branch
      %97 = sbr.rel (0) target = $region17
    $region16: #{_lambda_.5} parent=1 // pred_region
      %s99 = ssub.s32 16, 16
      %100 = vsyncadd [#allocation3], %s99
      %s102 = sshll.u32 [#allocation2], 4
      %s103 = int_to_ptr.vmem [resolvable:$true] %s102
      %105 = dma.vmem_to_hbm [thread:$0]  %s103, 16, %s3, [#allocation3]
    $region17: #{_lambda_.5} parent=1 // pred_fallthru
      _
    // Predicated region
    $region18: #{_lambda_.5} parent=1 // pred_check
      _
    $region19: #{_lambda_.5} parent=1 // pred_check_branch
      %107 = sbr.rel (0) target = $region21
    $region20: #{_lambda_.5} parent=1 // pred_region
      %s109 = ssub.s32 16, 16
      %110 = vsyncadd [#allocation5], %s109
      %s112 = sshll.u32 [#allocation4], 4
      %s113 = int_to_ptr.vmem [resolvable:$true] %s112
      %115 = dma.vmem_to_hbm [thread:$0]  %s113, 16, %s4, [#allocation5]
    $region21: #{_lambda_.5} parent=1 // pred_fallthru
      _
    // Predicated region
    $region22: #{_lambda_.5} parent=1 // pred_check
      _
    $region23: #{_lambda_.5} parent=1 // pred_check_branch
      %117 = sbr.rel (0) target = $region25
    $region24: #{_lambda_.5} parent=1 // pred_region
      %118 = dma.done [#allocation3], 16
    $region25: #{_lambda_.5} parent=1 // pred_fallthru
      _
    // Predicated region
    $region26: #{_lambda_.5} parent=1 // pred_check
      _
    $region27: #{_lambda_.5} parent=1 // pred_check_branch
      %120 = sbr.rel (0) target = $region29
    $region28: #{_lambda_.5} parent=1 // pred_region
      %121 = dma.done [#allocation5], 16
    $region29: #{_lambda_.5} parent=1 // pred_fallthru
      _
    %122 = vsyncpa [#allocation3], 1
    %123 = vsyncpa [#allocation5], 1

// kernel: _lambda_.3
$region0: #{_lambda_.3}
  #allocation0 [shape = 'u32[]', space=smem, size = 0x4, offset = 0x4, fixed_abs, tag = 'smem constant byte address 0x4 - core index']
  #allocation1 [shape = 'u32[144,128]{1,0:T(1,128)}', space=vmem, size = 0x12000, scoped, tag = 'internal scratch']
  #allocation2 [shape = 'f32[8,128]{1,0:T(8,128)}', space=vmem, size = 0x1000, scoped, tag = 'scratch operand']
  %s0 = inlined_call_operand.vmem [shape: bf16[8,128], index: 0, kind: input, shape index: {}]
  %s1 = inlined_call_operand.vmem [shape: bf16[128,128], index: 1, kind: input, shape index: {}]
  %s2 = inlined_call_operand.vmem [shape: f32[2,128,128], index: 2, kind: input, shape index: {}]
  %s3 = inlined_call_operand.vmem [shape: f32[2,1,128], index: 3, kind: input, shape index: {}]
  %s4 = inlined_call_operand.vmem [shape: f32[8,256], index: 4, kind: output, shape index: {}]
  %s5 = sld [smem:[#allocation0]]
  $region34: #{_lambda_.3} parent=0
    _
  %s7 = ssub.s32 1, %s5
  %s8 = scalar_select 0, %s7, %s5
  // Predicated region
  $region2: #{_lambda_.3} parent=0 // pred_check
    _
  $region3: #{_lambda_.3} parent=0 // pred_check_branch
    %10 = sbr.rel (0) target = $region5
  $region4: #{_lambda_.3} parent=0 // pred_region
    _
  $region5: #{_lambda_.3} parent=0 // pred_fallthru
    _
  // Predicated region
  $region6: #{_lambda_.3} parent=0 // pred_check
    _
  $region7: #{_lambda_.3} parent=0 // pred_check_branch
    %12 = sbr.rel (0) target = $region9
  $region8: #{_lambda_.3} parent=0 // pred_region
    _
  $region9: #{_lambda_.3} parent=0 // pred_fallthru
    _
  // Predicated region
  $region10: #{_lambda_.3} parent=0 // pred_check
    _
  $region11: #{_lambda_.3} parent=0 // pred_check_branch
    %14 = sbr.rel (0) target = $region13
  $region12: #{_lambda_.3} parent=0 // pred_region
    _
  $region13: #{_lambda_.3} parent=0 // pred_fallthru
    _
  // Predicated region
  $region14: #{_lambda_.3} parent=0 // pred_check
    _
  $region15: #{_lambda_.3} parent=0 // pred_check_branch
    %16 = sbr.rel (0) target = $region17
  $region16: #{_lambda_.3} parent=0 // pred_region
    _
  $region17: #{_lambda_.3} parent=0 // pred_fallthru
    _
  %p18 = scmp.eq.s32.totalorder 0, 0
  // Predicated region
  $region18: #{_lambda_.3} parent=0 // pred_check
    %p19 = pneg %p18
  $region19: #{_lambda_.3} parent=0 // pred_check_branch
    %21 = sbr.rel (%p19) target = $region21
  $region20: #{_lambda_.3} parent=0 // pred_region
    %22 = vst [vmem:[#allocation2] sm:$0xff] 0.0
  $region21: #{_lambda_.3} parent=0 // pred_fallthru
    _
  %v23 = vld [vmem:[#allocation2] sm:$0xff]
  %v24 = vld [vmem:[%s0] sm:$0xf]
  %v25 = vld [vmem:[%s1] sm:$0xf]
  %v26 = vld [vmem:[%s1 + $0x4] sm:$0xf]
  %v27 = vld [vmem:[%s1 + $0x8] sm:$0xf]
  %v28 = vld [vmem:[%s1 + $0xc] sm:$0xf]
  %v29 = vld [vmem:[%s1 + $0x10] sm:$0xf]
  %v30 = vld [vmem:[%s1 + $0x14] sm:$0xf]
  %v31 = vld [vmem:[%s1 + $0x18] sm:$0xf]
  %v32 = vld [vmem:[%s1 + $0x1c] sm:$0xf]
  %v33 = vld [vmem:[%s1 + $0x20] sm:$0xf]
  %v34 = vld [vmem:[%s1 + $0x24] sm:$0xf]
  %v35 = vld [vmem:[%s1 + $0x28] sm:$0xf]
  %v36 = vld [vmem:[%s1 + $0x2c] sm:$0xf]
  %v37 = vld [vmem:[%s1 + $0x30] sm:$0xf]
  %v38 = vld [vmem:[%s1 + $0x34] sm:$0xf]
  %v39 = vld [vmem:[%s1 + $0x38] sm:$0xf]
  %v40 = vld [vmem:[%s1 + $0x3c] sm:$0xf]
  %v57 = vunpack.c.l.b16 %v25
  %v58 = vunpack.c.l.b16 %v26
  %v59 = vunpack.c.l.b16 %v27
  %v60 = vunpack.c.l.b16 %v28
  %v61 = vunpack.c.l.b16 %v29
  %v62 = vunpack.c.l.b16 %v30
  %v63 = vunpack.c.l.b16 %v31
  %v64 = vunpack.c.l.b16 %v32
  %v65 = vunpack.c.l.b16 %v33
  %v66 = vunpack.c.l.b16 %v34
  %v67 = vunpack.c.l.b16 %v35
  %v68 = vunpack.c.l.b16 %v36
  %v69 = vunpack.c.l.b16 %v37
  %v70 = vunpack.c.l.b16 %v38
  %v71 = vunpack.c.l.b16 %v39
  %v72 = vunpack.c.l.b16 %v40
  %v73 = vpack.c.b16 %v58, %v57
  %v74 = vpack.c.b16 %v60, %v59
  %v75 = vpack.c.b16 %v62, %v61
  %v76 = vpack.c.b16 %v64, %v63
  %v77 = vpack.c.b16 %v66, %v65
  %v78 = vpack.c.b16 %v68, %v67
  %v79 = vpack.c.b16 %v70, %v69
  %v80 = vpack.c.b16 %v72, %v71
  %89 = vmatprep.subr.bf16.mxu0 0
  %90 = vmatpush1.bf16.msra.mxu0 %v80
  %91 = vmatprep.subr.bf16.mxu0 0
  %92 = vmatpush1.bf16.msra.mxu0 %v79
  %93 = vmatprep.subr.bf16.mxu0 0
  %94 = vmatpush1.bf16.msra.mxu0 %v78
  %95 = vmatprep.subr.bf16.mxu0 0
  %96 = vmatpush1.bf16.msra.mxu0 %v77
  %97 = vmatprep.subr.bf16.mxu0 0
  %98 = vmatpush1.bf16.msra.mxu0 %v76
  %99 = vmatprep.subr.bf16.mxu0 0
  %100 = vmatpush1.bf16.msra.mxu0 %v75
  %101 = vmatprep.subr.bf16.mxu0 0
  %102 = vmatpush1.bf16.msra.mxu0 %v74
  %103 = vmatprep.subr.bf16.mxu0 0
  %104 = vmatpush1.bf16.msra.mxu0 %v73
  %105 = vmatprep.subr.bf16.mxu0 0
  %106 = vmatpush2.bf16.msra.mxu0 0
  %107 = vmatprep.subr.bf16.mxu0 0
  %108 = vmatpush2.bf16.msra.mxu0 0
  %109 = vmatprep.subr.bf16.mxu0 0
  %110 = vmatpush2.bf16.msra.mxu0 0
  %111 = vmatprep.subr.bf16.mxu0 0
  %112 = vmatpush2.bf16.msra.mxu0 0
  %113 = vmatprep.subr.bf16.mxu0 0
  %114 = vmatpush2.bf16.msra.mxu0 0
  %115 = vmatprep.subr.bf16.mxu0 0
  %116 = vmatpush2.bf16.msra.mxu0 0
  %117 = vmatprep.subr.bf16.mxu0 0
  %118 = vmatpush2.bf16.msra.mxu0 0
  %119 = vmatprep.subr.bf16.mxu0 0
  %120 = vmatpush2.bf16.msra.mxu0 0
  %121 = vmatprep.mubr.bf16.mxu0 0
  %122 = vmatmul.mubr.bf16.gmra.mxu0 %v24
  %v123 = vpop.f32.mrf.mxu0
  %v124 = vadd.f32 0.0, %v123
  %v125 = vpop.f32.mrf.mxu0
  %v126 = vpop.f32.mrf.mxu0
  %v127 = vpop.f32.mrf.mxu0
  %128 = vdwg.mxu0
  %v129 = vadd.f32 %v23, %v124
  %130 = vst [vmem:[#allocation2] sm:$0xff] %v129
  // Predicated region
  $region22: #{_lambda_.3} parent=0 // pred_check
    %p131 = pneg %p18
  $region23: #{_lambda_.3} parent=0 // pred_check_branch
    %133 = sbr.rel (%p131) target = $region25
  $region24: #{_lambda_.3} parent=0 // pred_region
    %v134 = vld [vmem:[#allocation2] sm:$0xff]
    %v135 = vld [vmem:[%s2] sm:$0xff]
    %v136 = vld [vmem:[%s2 + $0x8] sm:$0xff]
    %v137 = vld [vmem:[%s2 + $0x10] sm:$0xff]
    %v138 = vld [vmem:[%s2 + $0x18] sm:$0xff]
    %v139 = vld [vmem:[%s2 + $0x20] sm:$0xff]
    %v140 = vld [vmem:[%s2 + $0x28] sm:$0xff]
    %v141 = vld [vmem:[%s2 + $0x30] sm:$0xff]
    %v142 = vld [vmem:[%s2 + $0x38] sm:$0xff]
    %v143 = vld [vmem:[%s2 + $0x40] sm:$0xff]
    %v144 = vld [vmem:[%s2 + $0x48] sm:$0xff]
    %v145 = vld [vmem:[%s2 + $0x50] sm:$0xff]
    %v146 = vld [vmem:[%s2 + $0x58] sm:$0xff]
    %v147 = vld [vmem:[%s2 + $0x60] sm:$0xff]
    %v148 = vld [vmem:[%s2 + $0x68] sm:$0xff]
    %v149 = vld [vmem:[%s2 + $0x70] sm:$0xff]
    %v150 = vld [vmem:[%s2 + $0x78] sm:$0xff]
    %v151 = vld [vmem:[%s3] sm:$0x1]
    %v153 = vlaneseq
    %v154 = vshrl.u32 %v153, 7
    %v155 = vsub.s32 0, %v154
    %v156 = vrot.slane %v151, %v155
    %158 = vmatprep.subr.mxu0 0.0
    %159 = vmatpush1.msra.mxu0 %v150
    %160 = vmatprep.subr.mxu0 0.0
    %161 = vmatpush1.msra.mxu0 %v149
    %162 = vmatprep.subr.mxu0 0.0
    %163 = vmatpush1.msra.mxu0 %v148
    %164 = vmatprep.subr.mxu0 0.0
    %165 = vmatpush1.msra.mxu0 %v147
    %166 = vmatprep.subr.mxu0 0.0
    %167 = vmatpush1.msra.mxu0 %v146
    %168 = vmatprep.subr.mxu0 0.0
    %169 = vmatpush1.msra.mxu0 %v145
    %170 = vmatprep.subr.mxu0 0.0
    %171 = vmatpush1.msra.mxu0 %v144
    %172 = vmatprep.subr.mxu0 0.0
    %173 = vmatpush1.msra.mxu0 %v143
    %174 = vmatprep.subr.mxu0 0.0
    %175 = vmatpush1.msra.mxu0 %v142
    %176 = vmatprep.subr.mxu0 0.0
    %177 = vmatpush1.msra.mxu0 %v141
    %178 = vmatprep.subr.mxu0 0.0
    %179 = vmatpush1.msra.mxu0 %v140
    %180 = vmatprep.subr.mxu0 0.0
    %181 = vmatpush1.msra.mxu0 %v139
    %182 = vmatprep.subr.mxu0 0.0
    %183 = vmatpush1.msra.mxu0 %v138
    %184 = vmatprep.subr.mxu0 0.0
    %185 = vmatpush1.msra.mxu0 %v137
    %186 = vmatprep.subr.mxu0 0.0
    %187 = vmatpush1.msra.mxu0 %v136
    %188 = vmatprep.subr.mxu0 0.0
    %189 = vmatpush1.msra.mxu0 %v135
    %190 = vmatprep.subr.mxu0 0.0
    %191 = vmatpush2.msra.mxu0 0.0
    %192 = vmatprep.subr.mxu0 0.0
    %193 = vmatpush2.msra.mxu0 0.0
    %194 = vmatprep.subr.mxu0 0.0
    %195 = vmatpush2.msra.mxu0 0.0
    %196 = vmatprep.subr.mxu0 0.0
    %197 = vmatpush2.msra.mxu0 0.0
    %198 = vmatprep.subr.mxu0 0.0
    %199 = vmatpush2.msra.mxu0 0.0
    %200 = vmatprep.subr.mxu0 0.0
    %201 = vmatpush2.msra.mxu0 0.0
    %202 = vmatprep.subr.mxu0 0.0
    %203 = vmatpush2.msra.mxu0 0.0
    %204 = vmatprep.subr.mxu0 0.0
    %205 = vmatpush2.msra.mxu0 0.0
    %206 = vmatprep.subr.mxu0 0.0
    %207 = vmatpush2.msra.mxu0 0.0
    %208 = vmatprep.subr.mxu0 0.0
    %209 = vmatpush2.msra.mxu0 0.0
    %210 = vmatprep.subr.mxu0 0.0
    %211 = vmatpush2.msra.mxu0 0.0
    %212 = vmatprep.subr.mxu0 0.0
    %213 = vmatpush2.msra.mxu0 0.0
    %214 = vmatprep.subr.mxu0 0.0
    %215 = vmatpush2.msra.mxu0 0.0
    %216 = vmatprep.subr.mxu0 0.0
    %217 = vmatpush2.msra.mxu0 0.0
    %218 = vmatprep.subr.mxu0 0.0
    %219 = vmatpush2.msra.mxu0 0.0
    %220 = vmatprep.subr.mxu0 0.0
    %221 = vmatpush2.msra.mxu0 0.0
    %222 = vmatprep.mubr.f32.mxu0 0.0
    %223 = vmatmul.mubr.f32.gmra.mxu0 %v134
    %v224 = vpop.f32.mrf.mxu0
    %v225 = vadd.f32 %v156, %v224
    %v226 = vpop.f32.mrf.mxu0
    %227 = vdwg.mxu0
    %vm228 = vcmp.ge.f32.partialorder %v225, 0.0
    %v229 = vmul.f32 %v225, 0.2
    %v230 = vsel %vm228, %v225, %v229
    %v231 = vmul.f32 %v230, %v230
    %232 = vadd.xlane.f32.xlu0 %v231
    %v233 = vpop.xlane.xlu0 %232
    %v234 = vmax.f32 %v233, 1e-24
    %v235 = vrsqrt.pop %v234
    %v236 = vmul.f32 %v230, %v235
    %237 = vst [vmem:[%s4] sm:$0xff] %v236
    %s238 = scalar_lea.vmem %s2, 128
    %v239 = vld [vmem:[%s238] sm:$0xff]
    %v240 = vld [vmem:[%s238 + $0x8] sm:$0xff]
    %v241 = vld [vmem:[%s238 + $0x10] sm:$0xff]
    %v242 = vld [vmem:[%s238 + $0x18] sm:$0xff]
    %v243 = vld [vmem:[%s238 + $0x20] sm:$0xff]
    %v244 = vld [vmem:[%s238 + $0x28] sm:$0xff]
    %v245 = vld [vmem:[%s238 + $0x30] sm:$0xff]
    %v246 = vld [vmem:[%s238 + $0x38] sm:$0xff]
    %v247 = vld [vmem:[%s238 + $0x40] sm:$0xff]
    %v248 = vld [vmem:[%s238 + $0x48] sm:$0xff]
    %v249 = vld [vmem:[%s238 + $0x50] sm:$0xff]
    %v250 = vld [vmem:[%s238 + $0x58] sm:$0xff]
    %v251 = vld [vmem:[%s238 + $0x60] sm:$0xff]
    %v252 = vld [vmem:[%s238 + $0x68] sm:$0xff]
    %v253 = vld [vmem:[%s238 + $0x70] sm:$0xff]
    %v254 = vld [vmem:[%s238 + $0x78] sm:$0xff]
    %s255 = scalar_lea.vmem %s3, 1
    %v256 = vld [vmem:[%s255] sm:$0x1]
    %v258 = vlaneseq
    %v259 = vshrl.u32 %v258, 7
    %v260 = vsub.s32 0, %v259
    %v261 = vrot.slane %v256, %v260
    %263 = vmatprep.subr.mxu0 0.0
    %264 = vmatpush1.msra.mxu0 %v254
    %265 = vmatprep.subr.mxu0 0.0
    %266 = vmatpush1.msra.mxu0 %v253
    %267 = vmatprep.subr.mxu0 0.0
    %268 = vmatpush1.msra.mxu0 %v252
    %269 = vmatprep.subr.mxu0 0.0
    %270 = vmatpush1.msra.mxu0 %v251
    %271 = vmatprep.subr.mxu0 0.0
    %272 = vmatpush1.msra.mxu0 %v250
    %273 = vmatprep.subr.mxu0 0.0
    %274 = vmatpush1.msra.mxu0 %v249
    %275 = vmatprep.subr.mxu0 0.0
    %276 = vmatpush1.msra.mxu0 %v248
    %277 = vmatprep.subr.mxu0 0.0
    %278 = vmatpush1.msra.mxu0 %v247
    %279 = vmatprep.subr.mxu0 0.0
    %280 = vmatpush1.msra.mxu0 %v246
    %281 = vmatprep.subr.mxu0 0.0
    %282 = vmatpush1.msra.mxu0 %v245
    %283 = vmatprep.subr.mxu0 0.0
    %284 = vmatpush1.msra.mxu0 %v244
    %285 = vmatprep.subr.mxu0 0.0
    %286 = vmatpush1.msra.mxu0 %v243
    %287 = vmatprep.subr.mxu0 0.0
    %288 = vmatpush1.msra.mxu0 %v242
    %289 = vmatprep.subr.mxu0 0.0
    %290 = vmatpush1.msra.mxu0 %v241
    %291 = vmatprep.subr.mxu0 0.0
    %292 = vmatpush1.msra.mxu0 %v240
    %293 = vmatprep.subr.mxu0 0.0
    %294 = vmatpush1.msra.mxu0 %v239
    %295 = vmatprep.subr.mxu0 0.0
    %296 = vmatpush2.msra.mxu0 0.0
    %297 = vmatprep.subr.mxu0 0.0
    %298 = vmatpush2.msra.mxu0 0.0
    %299 = vmatprep.subr.mxu0 0.0
    %300 = vmatpush2.msra.mxu0 0.0
    %301 = vmatprep.subr.mxu0 0.0
    %302 = vmatpush2.msra.mxu0 0.0
    %303 = vmatprep.subr.mxu0 0.0
    %304 = vmatpush2.msra.mxu0 0.0
    %305 = vmatprep.subr.mxu0 0.0
    %306 = vmatpush2.msra.mxu0 0.0
    %307 = vmatprep.subr.mxu0 0.0
    %308 = vmatpush2.msra.mxu0 0.0
    %309 = vmatprep.subr.mxu0 0.0
    %310 = vmatpush2.msra.mxu0 0.0
    %311 = vmatprep.subr.mxu0 0.0
    %312 = vmatpush2.msra.mxu0 0.0
    %313 = vmatprep.subr.mxu0 0.0
    %314 = vmatpush2.msra.mxu0 0.0
    %315 = vmatprep.subr.mxu0 0.0
    %316 = vmatpush2.msra.mxu0 0.0
    %317 = vmatprep.subr.mxu0 0.0
    %318 = vmatpush2.msra.mxu0 0.0
    %319 = vmatprep.subr.mxu0 0.0
    %320 = vmatpush2.msra.mxu0 0.0
    %321 = vmatprep.subr.mxu0 0.0
    %322 = vmatpush2.msra.mxu0 0.0
    %323 = vmatprep.subr.mxu0 0.0
    %324 = vmatpush2.msra.mxu0 0.0
    %325 = vmatprep.subr.mxu0 0.0
    %326 = vmatpush2.msra.mxu0 0.0
    %327 = vmatprep.mubr.f32.mxu0 0.0
    %328 = vmatmul.mubr.f32.gmra.mxu0 %v134
    %v329 = vpop.f32.mrf.mxu0
    %v330 = vadd.f32 %v261, %v329
    %v331 = vpop.f32.mrf.mxu0
    %332 = vdwg.mxu0
    %vm333 = vcmp.ge.f32.partialorder %v330, 0.0
    %v334 = vmul.f32 %v330, 0.2
    %v335 = vsel %vm333, %v330, %v334
    %v336 = vmul.f32 %v335, %v335
    %337 = vadd.xlane.f32.xlu0 %v336
    %v338 = vpop.xlane.xlu0 %337
    %v339 = vmax.f32 %v338, 1e-24
    %v340 = vrsqrt.pop %v339
    %v341 = vmul.f32 %v335, %v340
    %342 = vst [vmem:[%s4 + $0x8] sm:$0xff] %v341
  $region25: #{_lambda_.3} parent=0 // pred_fallthru
    _
  // Predicated region
  $region26: #{_lambda_.3} parent=0 // pred_check
    _
  $region27: #{_lambda_.3} parent=0 // pred_check_branch
    %344 = sbr.rel (0) target = $region29
  $region28: #{_lambda_.3} parent=0 // pred_region
    _
  $region29: #{_lambda_.3} parent=0 // pred_fallthru
    _
  // Predicated region
  $region30: #{_lambda_.3} parent=0 // pred_check
    _
  $region31: #{_lambda_.3} parent=0 // pred_check_branch
    %346 = sbr.rel (0) target = $region33
  $region32: #{_lambda_.3} parent=0 // pred_region
    _
  $region33: #{_lambda_.3} parent=0 // pred_fallthru
    _

// kernel: _lambda_.4
$region0: #{_lambda_.4}
  #allocation0 [shape = 'u32[]', space=smem, size = 0x4, offset = 0x4, fixed_abs, tag = 'smem constant byte address 0x4 - core index']
  #allocation1 [shape = 'u32[144,128]{1,0:T(1,128)}', space=vmem, size = 0x12000, scoped, tag = 'internal scratch']
  #allocation2 [shape = 'f32[128,128]{1,0:T(8,128)}', space=vmem, size = 0x10000, scoped, tag = 'scratch operand']
  %s0 = inlined_call_operand.vmem [shape: bf16[8,128], index: 0, kind: input, shape index: {}]
  %s1 = inlined_call_operand.vmem [shape: bf16[8,128], index: 1, kind: input, shape index: {}]
  %s2 = inlined_call_operand.vmem [shape: f32[2,128,128], index: 2, kind: input, shape index: {}]
  %s3 = inlined_call_operand.vmem [shape: f32[2,1,128], index: 3, kind: input, shape index: {}]
  %s4 = inlined_call_operand.vmem [shape: f32[128,256], index: 4, kind: output, shape index: {}]
  %s5 = sld [smem:[#allocation0]]
  $region34: #{_lambda_.4} parent=0
    _
  %s7 = ssub.s32 1, %s5
  %s8 = scalar_select 0, %s7, %s5
  // Predicated region
  $region2: #{_lambda_.4} parent=0 // pred_check
    _
  $region3: #{_lambda_.4} parent=0 // pred_check_branch
    %10 = sbr.rel (0) target = $region5
  $region4: #{_lambda_.4} parent=0 // pred_region
    _
  $region5: #{_lambda_.4} parent=0 // pred_fallthru
    _
  // Predicated region
  $region6: #{_lambda_.4} parent=0 // pred_check
    _
  $region7: #{_lambda_.4} parent=0 // pred_check_branch
    %12 = sbr.rel (0) target = $region9
  $region8: #{_lambda_.4} parent=0 // pred_region
    _
  $region9: #{_lambda_.4} parent=0 // pred_fallthru
    _
  // Predicated region
  $region10: #{_lambda_.4} parent=0 // pred_check
    _
  $region11: #{_lambda_.4} parent=0 // pred_check_branch
    %14 = sbr.rel (0) target = $region13
  $region12: #{_lambda_.4} parent=0 // pred_region
    _
  $region13: #{_lambda_.4} parent=0 // pred_fallthru
    _
  // Predicated region
  $region14: #{_lambda_.4} parent=0 // pred_check
    _
  $region15: #{_lambda_.4} parent=0 // pred_check_branch
    %16 = sbr.rel (0) target = $region17
  $region16: #{_lambda_.4} parent=0 // pred_region
    _
  $region17: #{_lambda_.4} parent=0 // pred_fallthru
    _
  %p18 = scmp.eq.s32.totalorder 0, 0
  // Predicated region
  $region18: #{_lambda_.4} parent=0 // pred_check
    %p19 = pneg %p18
  $region19: #{_lambda_.4} parent=0 // pred_check_branch
    %21 = sbr.rel (%p19) target = $region21
  $region20: #{_lambda_.4} parent=0 // pred_region
    %22 = vst [vmem:[#allocation2] sm:$0xff] 0.0
    %23 = vst [vmem:[#allocation2 + $0x8] sm:$0xff] 0.0
    %24 = vst [vmem:[#allocation2 + $0x10] sm:$0xff] 0.0
    %25 = vst [vmem:[#allocation2 + $0x18] sm:$0xff] 0.0
    %26 = vst [vmem:[#allocation2 + $0x20] sm:$0xff] 0.0
    %27 = vst [vmem:[#allocation2 + $0x28] sm:$0xff] 0.0
    %28 = vst [vmem:[#allocation2 + $0x30] sm:$0xff] 0.0
    %29 = vst [vmem:[#allocation2 + $0x38] sm:$0xff] 0.0
    %30 = vst [vmem:[#allocation2 + $0x40] sm:$0xff] 0.0
    %31 = vst [vmem:[#allocation2 + $0x48] sm:$0xff] 0.0
    %32 = vst [vmem:[#allocation2 + $0x50] sm:$0xff] 0.0
    %33 = vst [vmem:[#allocation2 + $0x58] sm:$0xff] 0.0
    %34 = vst [vmem:[#allocation2 + $0x60] sm:$0xff] 0.0
    %35 = vst [vmem:[#allocation2 + $0x68] sm:$0xff] 0.0
    %36 = vst [vmem:[#allocation2 + $0x70] sm:$0xff] 0.0
    %37 = vst [vmem:[#allocation2 + $0x78] sm:$0xff] 0.0
  $region21: #{_lambda_.4} parent=0 // pred_fallthru
    _
  %v38 = vld [vmem:[#allocation2] sm:$0xff]
  %v39 = vld [vmem:[#allocation2 + $0x8] sm:$0xff]
  %v40 = vld [vmem:[#allocation2 + $0x10] sm:$0xff]
  %v41 = vld [vmem:[#allocation2 + $0x18] sm:$0xff]
  %v42 = vld [vmem:[#allocation2 + $0x20] sm:$0xff]
  %v43 = vld [vmem:[#allocation2 + $0x28] sm:$0xff]
  %v44 = vld [vmem:[#allocation2 + $0x30] sm:$0xff]
  %v45 = vld [vmem:[#allocation2 + $0x38] sm:$0xff]
  %v46 = vld [vmem:[#allocation2 + $0x40] sm:$0xff]
  %v47 = vld [vmem:[#allocation2 + $0x48] sm:$0xff]
  %v48 = vld [vmem:[#allocation2 + $0x50] sm:$0xff]
  %v49 = vld [vmem:[#allocation2 + $0x58] sm:$0xff]
  %v50 = vld [vmem:[#allocation2 + $0x60] sm:$0xff]
  %v51 = vld [vmem:[#allocation2 + $0x68] sm:$0xff]
  %v52 = vld [vmem:[#allocation2 + $0x70] sm:$0xff]
  %v53 = vld [vmem:[#allocation2 + $0x78] sm:$0xff]
  %v54 = vld [vmem:[%s0] sm:$0xf]
  %v55 = vld [vmem:[%s1] sm:$0xf]
  %56 = vxpose.xlu0.c.b16.start [1/8] %v54, 128
  %57 = vxpose.xlu0.c.b16.cont [2/8] 0, 128
  %58 = vxpose.xlu0.c.b16.cont [3/8] 0, 128
  %59 = vxpose.xlu0.c.b16.cont [4/8] 0, 128
  %60 = vxpose.xlu0.c.b16.cont [5/8] 0, 128
  %61 = vxpose.xlu0.c.b16.cont [6/8] 0, 128
  %62 = vxpose.xlu0.c.b16.cont [7/8] 0, 128
  %63 = vxpose.xlu0.c.b16.end [8/8] 0, 128
  %v64 = vpop.trf.xlu0
  %v65 = vpop.trf.xlu0
  %v66 = vpop.trf.xlu0
  %v67 = vpop.trf.xlu0
  %v68 = vpop.trf.xlu0
  %v69 = vpop.trf.xlu0
  %v70 = vpop.trf.xlu0
  %v71 = vpop.trf.xlu0
  %vm72 = vcmask 64512
  %v74 = vsel %vm72, %v64, 0
  %v77 = vsel %vm72, %v65, 0
  %v80 = vsel %vm72, %v66, 0
  %v83 = vsel %vm72, %v67, 0
  %v86 = vsel %vm72, %v68, 0
  %v89 = vsel %vm72, %v69, 0
  %v92 = vsel %vm72, %v70, 0
  %v95 = vsel %vm72, %v71, 0
  %vm97 = vcmask 1043456
  %v99 = vsel %vm97, %v55, 0
  %101 = vmatprep.subr.bf16.mxu0 0
  %102 = vmatpush1.bf16.msra.mxu0 0
  %103 = vmatprep.subr.bf16.mxu0 0
  %104 = vmatpush1.bf16.msra.mxu0 0
  %105 = vmatprep.subr.bf16.mxu0 0
  %106 = vmatpush1.bf16.msra.mxu0 0
  %107 = vmatprep.subr.bf16.mxu0 0
  %108 = vmatpush1.bf16.msra.mxu0 0
  %109 = vmatprep.subr.bf16.mxu0 0
  %110 = vmatpush1.bf16.msra.mxu0 0
  %111 = vmatprep.subr.bf16.mxu0 0
  %112 = vmatpush1.bf16.msra.mxu0 0
  %113 = vmatprep.subr.bf16.mxu0 0
  %114 = vmatpush1.bf16.msra.mxu0 0
  %115 = vmatprep.subr.bf16.mxu0 0
  %116 = vmatpush1.bf16.msra.mxu0 %v99
  %117 = vmatprep.subr.bf16.mxu0 0
  %118 = vmatpush2.bf16.msra.mxu0 0
  %119 = vmatprep.subr.bf16.mxu0 0
  %120 = vmatpush2.bf16.msra.mxu0 0
  %121 = vmatprep.subr.bf16.mxu0 0
  %122 = vmatpush2.bf16.msra.mxu0 0
  %123 = vmatprep.subr.bf16.mxu0 0
  %124 = vmatpush2.bf16.msra.mxu0 0
  %125 = vmatprep.subr.bf16.mxu0 0
  %126 = vmatpush2.bf16.msra.mxu0 0
  %127 = vmatprep.subr.bf16.mxu0 0
  %128 = vmatpush2.bf16.msra.mxu0 0
  %129 = vmatprep.subr.bf16.mxu0 0
  %130 = vmatpush2.bf16.msra.mxu0 0
  %131 = vmatprep.subr.bf16.mxu0 0
  %132 = vmatpush2.bf16.msra.mxu0 0
  %133 = vmatprep.mubr.bf16.mxu0 0
  %134 = vmatmul.mubr.bf16.gmra.mxu0 %v74
  %v135 = vpop.f32.mrf.mxu0
  %v136 = vadd.f32 0.0, %v135
  %v137 = vpop.f32.mrf.mxu0
  %v138 = vpop.f32.mrf.mxu0
  %v139 = vadd.f32 0.0, %v138
  %v140 = vpop.f32.mrf.mxu0
  %141 = vmatprep.mubr.bf16.mxu0 0
  %142 = vmatmul.mubr.bf16.gmra.mxu0 %v77
  %v143 = vpop.f32.mrf.mxu0
  %v144 = vadd.f32 0.0, %v143
  %v145 = vpop.f32.mrf.mxu0
  %v146 = vpop.f32.mrf.mxu0
  %v147 = vadd.f32 0.0, %v146
  %v148 = vpop.f32.mrf.mxu0
  %149 = vmatprep.mubr.bf16.mxu0 0
  %150 = vmatmul.mubr.bf16.gmra.mxu0 %v80
  %v151 = vpop.f32.mrf.mxu0
  %v152 = vadd.f32 0.0, %v151
  %v153 = vpop.f32.mrf.mxu0
  %v154 = vpop.f32.mrf.mxu0
  %v155 = vadd.f32 0.0, %v154
  %v156 = vpop.f32.mrf.mxu0
  %157 = vmatprep.mubr.bf16.mxu0 0
  %158 = vmatmul.mubr.bf16.gmra.mxu0 %v83
  %v159 = vpop.f32.mrf.mxu0
  %v160 = vadd.f32 0.0, %v159
  %v161 = vpop.f32.mrf.mxu0
  %v162 = vpop.f32.mrf.mxu0
  %v163 = vadd.f32 0.0, %v162
  %v164 = vpop.f32.mrf.mxu0
  %165 = vmatprep.mubr.bf16.mxu0 0
  %166 = vmatmul.mubr.bf16.gmra.mxu0 %v86
  %v167 = vpop.f32.mrf.mxu0
  %v168 = vadd.f32 0.0, %v167
  %v169 = vpop.f32.mrf.mxu0
  %v170 = vpop.f32.mrf.mxu0
  %v171 = vadd.f32 0.0, %v170
  %v172 = vpop.f32.mrf.mxu0
  %173 = vmatprep.mubr.bf16.mxu0 0
  %174 = vmatmul.mubr.bf16.gmra.mxu0 %v89
  %v175 = vpop.f32.mrf.mxu0
  %v176 = vadd.f32 0.0, %v175
  %v177 = vpop.f32.mrf.mxu0
  %v178 = vpop.f32.mrf.mxu0
  %v179 = vadd.f32 0.0, %v178
  %v180 = vpop.f32.mrf.mxu0
  %181 = vmatprep.mubr.bf16.mxu0 0
  %182 = vmatmul.mubr.bf16.gmra.mxu0 %v92
  %v183 = vpop.f32.mrf.mxu0
  %v184 = vadd.f32 0.0, %v183
  %v185 = vpop.f32.mrf.mxu0
  %v186 = vpop.f32.mrf.mxu0
  %v187 = vadd.f32 0.0, %v186
  %v188 = vpop.f32.mrf.mxu0
  %189 = vmatprep.mubr.bf16.mxu0 0
  %190 = vmatmul.mubr.bf16.gmra.mxu0 %v95
  %v191 = vpop.f32.mrf.mxu0
  %v192 = vadd.f32 0.0, %v191
  %v193 = vpop.f32.mrf.mxu0
  %v194 = vpop.f32.mrf.mxu0
  %v195 = vadd.f32 0.0, %v194
  %v196 = vpop.f32.mrf.mxu0
  %197 = vdwg.mxu0
  %v198 = vadd.f32 %v38, %v136
  %v199 = vadd.f32 %v39, %v139
  %v200 = vadd.f32 %v40, %v144
  %v201 = vadd.f32 %v41, %v147
  %v202 = vadd.f32 %v42, %v152
  %v203 = vadd.f32 %v43, %v155
  %v204 = vadd.f32 %v44, %v160
  %v205 = vadd.f32 %v45, %v163
  %v206 = vadd.f32 %v46, %v168
  %v207 = vadd.f32 %v47, %v171
  %v208 = vadd.f32 %v48, %v176
  %v209 = vadd.f32 %v49, %v179
  %v210 = vadd.f32 %v50, %v184
  %v211 = vadd.f32 %v51, %v187
  %v212 = vadd.f32 %v52, %v192
  %v213 = vadd.f32 %v53, %v195
  %214 = vst [vmem:[#allocation2] sm:$0xff] %v198
  %215 = vst [vmem:[#allocation2 + $0x8] sm:$0xff] %v199
  %216 = vst [vmem:[#allocation2 + $0x10] sm:$0xff] %v200
  %217 = vst [vmem:[#allocation2 + $0x18] sm:$0xff] %v201
  %218 = vst [vmem:[#allocation2 + $0x20] sm:$0xff] %v202
  %219 = vst [vmem:[#allocation2 + $0x28] sm:$0xff] %v203
  %220 = vst [vmem:[#allocation2 + $0x30] sm:$0xff] %v204
  %221 = vst [vmem:[#allocation2 + $0x38] sm:$0xff] %v205
  %222 = vst [vmem:[#allocation2 + $0x40] sm:$0xff] %v206
  %223 = vst [vmem:[#allocation2 + $0x48] sm:$0xff] %v207
  %224 = vst [vmem:[#allocation2 + $0x50] sm:$0xff] %v208
  %225 = vst [vmem:[#allocation2 + $0x58] sm:$0xff] %v209
  %226 = vst [vmem:[#allocation2 + $0x60] sm:$0xff] %v210
  %227 = vst [vmem:[#allocation2 + $0x68] sm:$0xff] %v211
  %228 = vst [vmem:[#allocation2 + $0x70] sm:$0xff] %v212
  %229 = vst [vmem:[#allocation2 + $0x78] sm:$0xff] %v213
  // Predicated region
  $region22: #{_lambda_.4} parent=0 // pred_check
    %p230 = pneg %p18
  $region23: #{_lambda_.4} parent=0 // pred_check_branch
    %232 = sbr.rel (%p230) target = $region25
  $region24: #{_lambda_.4} parent=0 // pred_region
    %v233 = vld [vmem:[#allocation2] sm:$0xff]
    %v234 = vld [vmem:[#allocation2 + $0x8] sm:$0xff]
    %v235 = vld [vmem:[#allocation2 + $0x10] sm:$0xff]
    %v236 = vld [vmem:[#allocation2 + $0x18] sm:$0xff]
    %v237 = vld [vmem:[#allocation2 + $0x20] sm:$0xff]
    %v238 = vld [vmem:[#allocation2 + $0x28] sm:$0xff]
    %v239 = vld [vmem:[#allocation2 + $0x30] sm:$0xff]
    %v240 = vld [vmem:[#allocation2 + $0x38] sm:$0xff]
    %v241 = vld [vmem:[#allocation2 + $0x40] sm:$0xff]
    %v242 = vld [vmem:[#allocation2 + $0x48] sm:$0xff]
    %v243 = vld [vmem:[#allocation2 + $0x50] sm:$0xff]
    %v244 = vld [vmem:[#allocation2 + $0x58] sm:$0xff]
    %v245 = vld [vmem:[#allocation2 + $0x60] sm:$0xff]
    %v246 = vld [vmem:[#allocation2 + $0x68] sm:$0xff]
    %v247 = vld [vmem:[#allocation2 + $0x70] sm:$0xff]
    %v248 = vld [vmem:[#allocation2 + $0x78] sm:$0xff]
    %v249 = vld [vmem:[%s2] sm:$0xff]
    %v250 = vld [vmem:[%s2 + $0x8] sm:$0xff]
    %v251 = vld [vmem:[%s2 + $0x10] sm:$0xff]
    %v252 = vld [vmem:[%s2 + $0x18] sm:$0xff]
    %v253 = vld [vmem:[%s2 + $0x20] sm:$0xff]
    %v254 = vld [vmem:[%s2 + $0x28] sm:$0xff]
    %v255 = vld [vmem:[%s2 + $0x30] sm:$0xff]
    %v256 = vld [vmem:[%s2 + $0x38] sm:$0xff]
    %v257 = vld [vmem:[%s2 + $0x40] sm:$0xff]
    %v258 = vld [vmem:[%s2 + $0x48] sm:$0xff]
    %v259 = vld [vmem:[%s2 + $0x50] sm:$0xff]
    %v260 = vld [vmem:[%s2 + $0x58] sm:$0xff]
    %v261 = vld [vmem:[%s2 + $0x60] sm:$0xff]
    %v262 = vld [vmem:[%s2 + $0x68] sm:$0xff]
    %v263 = vld [vmem:[%s2 + $0x70] sm:$0xff]
    %v264 = vld [vmem:[%s2 + $0x78] sm:$0xff]
    %v265 = vld [vmem:[%s3] sm:$0x1]
    %v267 = vlaneseq
    %v268 = vshrl.u32 %v267, 7
    %v269 = vsub.s32 0, %v268
    %v270 = vrot.slane %v265, %v269
    %272 = vmatprep.subr.mxu0 0.0
    %273 = vmatpush1.msra.mxu0 %v264
    %274 = vmatprep.subr.mxu0 0.0
    %275 = vmatpush1.msra.mxu0 %v263
    %276 = vmatprep.subr.mxu0 0.0
    %277 = vmatpush1.msra.mxu0 %v262
    %278 = vmatprep.subr.mxu0 0.0
    %279 = vmatpush1.msra.mxu0 %v261
    %280 = vmatprep.subr.mxu0 0.0
    %281 = vmatpush1.msra.mxu0 %v260
    %282 = vmatprep.subr.mxu0 0.0
    %283 = vmatpush1.msra.mxu0 %v259
    %284 = vmatprep.subr.mxu0 0.0
    %285 = vmatpush1.msra.mxu0 %v258
    %286 = vmatprep.subr.mxu0 0.0
    %287 = vmatpush1.msra.mxu0 %v257
    %288 = vmatprep.subr.mxu0 0.0
    %289 = vmatpush1.msra.mxu0 %v256
    %290 = vmatprep.subr.mxu0 0.0
    %291 = vmatpush1.msra.mxu0 %v255
    %292 = vmatprep.subr.mxu0 0.0
    %293 = vmatpush1.msra.mxu0 %v254
    %294 = vmatprep.subr.mxu0 0.0
    %295 = vmatpush1.msra.mxu0 %v253
    %296 = vmatprep.subr.mxu0 0.0
    %297 = vmatpush1.msra.mxu0 %v252
    %298 = vmatprep.subr.mxu0 0.0
    %299 = vmatpush1.msra.mxu0 %v251
    %300 = vmatprep.subr.mxu0 0.0
    %301 = vmatpush1.msra.mxu0 %v250
    %302 = vmatprep.subr.mxu0 0.0
    %303 = vmatpush1.msra.mxu0 %v249
    %304 = vmatprep.subr.mxu0 0.0
    %305 = vmatpush2.msra.mxu0 0.0
    %306 = vmatprep.subr.mxu0 0.0
    %307 = vmatpush2.msra.mxu0 0.0
    %308 = vmatprep.subr.mxu0 0.0
    %309 = vmatpush2.msra.mxu0 0.0
    %310 = vmatprep.subr.mxu0 0.0
    %311 = vmatpush2.msra.mxu0 0.0
    %312 = vmatprep.subr.mxu0 0.0
    %313 = vmatpush2.msra.mxu0 0.0
    %314 = vmatprep.subr.mxu0 0.0
    %315 = vmatpush2.msra.mxu0 0.0
    %316 = vmatprep.subr.mxu0 0.0
    %317 = vmatpush2.msra.mxu0 0.0
    %318 = vmatprep.subr.mxu0 0.0
    %319 = vmatpush2.msra.mxu0 0.0
    %320 = vmatprep.subr.mxu0 0.0
    %321 = vmatpush2.msra.mxu0 0.0
    %322 = vmatprep.subr.mxu0 0.0
    %323 = vmatpush2.msra.mxu0 0.0
    %324 = vmatprep.subr.mxu0 0.0
    %325 = vmatpush2.msra.mxu0 0.0
    %326 = vmatprep.subr.mxu0 0.0
    %327 = vmatpush2.msra.mxu0 0.0
    %328 = vmatprep.subr.mxu0 0.0
    %329 = vmatpush2.msra.mxu0 0.0
    %330 = vmatprep.subr.mxu0 0.0
    %331 = vmatpush2.msra.mxu0 0.0
    %332 = vmatprep.subr.mxu0 0.0
    %333 = vmatpush2.msra.mxu0 0.0
    %334 = vmatprep.subr.mxu0 0.0
    %335 = vmatpush2.msra.mxu0 0.0
    %336 = vmatprep.mubr.f32.mxu0 0.0
    %337 = vmatmul.mubr.f32.gmra.mxu0 %v233
    %v338 = vpop.f32.mrf.mxu0
    %v339 = vadd.f32 %v270, %v338
    %v340 = vpop.f32.mrf.mxu0
    %341 = vmatprep.mubr.f32.mxu0 0.0
    %342 = vmatmul.mubr.f32.gmra.mxu0 %v234
    %v343 = vpop.f32.mrf.mxu0
    %v344 = vadd.f32 %v270, %v343
    %v345 = vpop.f32.mrf.mxu0
    %346 = vmatprep.mubr.f32.mxu0 0.0
    %347 = vmatmul.mubr.f32.gmra.mxu0 %v235
    %v348 = vpop.f32.mrf.mxu0
    %v349 = vadd.f32 %v270, %v348
    %v350 = vpop.f32.mrf.mxu0
    %351 = vmatprep.mubr.f32.mxu0 0.0
    %352 = vmatmul.mubr.f32.gmra.mxu0 %v236
    %v353 = vpop.f32.mrf.mxu0
    %v354 = vadd.f32 %v270, %v353
    %v355 = vpop.f32.mrf.mxu0
    %356 = vmatprep.mubr.f32.mxu0 0.0
    %357 = vmatmul.mubr.f32.gmra.mxu0 %v237
    %v358 = vpop.f32.mrf.mxu0
    %v359 = vadd.f32 %v270, %v358
    %v360 = vpop.f32.mrf.mxu0
    %361 = vmatprep.mubr.f32.mxu0 0.0
    %362 = vmatmul.mubr.f32.gmra.mxu0 %v238
    %v363 = vpop.f32.mrf.mxu0
    %v364 = vadd.f32 %v270, %v363
    %v365 = vpop.f32.mrf.mxu0
    %366 = vmatprep.mubr.f32.mxu0 0.0
    %367 = vmatmul.mubr.f32.gmra.mxu0 %v239
    %v368 = vpop.f32.mrf.mxu0
    %v369 = vadd.f32 %v270, %v368
    %v370 = vpop.f32.mrf.mxu0
    %371 = vmatprep.mubr.f32.mxu0 0.0
    %372 = vmatmul.mubr.f32.gmra.mxu0 %v240
    %v373 = vpop.f32.mrf.mxu0
    %v374 = vadd.f32 %v270, %v373
    %v375 = vpop.f32.mrf.mxu0
    %376 = vmatprep.mubr.f32.mxu0 0.0
    %377 = vmatmul.mubr.f32.gmra.mxu0 %v241
    %v378 = vpop.f32.mrf.mxu0
    %v379 = vadd.f32 %v270, %v378
    %v380 = vpop.f32.mrf.mxu0
    %381 = vmatprep.mubr.f32.mxu0 0.0
    %382 = vmatmul.mubr.f32.gmra.mxu0 %v242
    %v383 = vpop.f32.mrf.mxu0
    %v384 = vadd.f32 %v270, %v383
    %v385 = vpop.f32.mrf.mxu0
    %386 = vmatprep.mubr.f32.mxu0 0.0
    %387 = vmatmul.mubr.f32.gmra.mxu0 %v243
    %v388 = vpop.f32.mrf.mxu0
    %v389 = vadd.f32 %v270, %v388
    %v390 = vpop.f32.mrf.mxu0
    %391 = vmatprep.mubr.f32.mxu0 0.0
    %392 = vmatmul.mubr.f32.gmra.mxu0 %v244
    %v393 = vpop.f32.mrf.mxu0
    %v394 = vadd.f32 %v270, %v393
    %v395 = vpop.f32.mrf.mxu0
    %396 = vmatprep.mubr.f32.mxu0 0.0
    %397 = vmatmul.mubr.f32.gmra.mxu0 %v245
    %v398 = vpop.f32.mrf.mxu0
    %v399 = vadd.f32 %v270, %v398
    %v400 = vpop.f32.mrf.mxu0
    %401 = vmatprep.mubr.f32.mxu0 0.0
    %402 = vmatmul.mubr.f32.gmra.mxu0 %v246
    %v403 = vpop.f32.mrf.mxu0
    %v404 = vadd.f32 %v270, %v403
    %v405 = vpop.f32.mrf.mxu0
    %406 = vmatprep.mubr.f32.mxu0 0.0
    %407 = vmatmul.mubr.f32.gmra.mxu0 %v247
    %v408 = vpop.f32.mrf.mxu0
    %v409 = vadd.f32 %v270, %v408
    %v410 = vpop.f32.mrf.mxu0
    %411 = vmatprep.mubr.f32.mxu0 0.0
    %412 = vmatmul.mubr.f32.gmra.mxu0 %v248
    %v413 = vpop.f32.mrf.mxu0
    %v414 = vadd.f32 %v270, %v413
    %v415 = vpop.f32.mrf.mxu0
    %416 = vdwg.mxu0
    %vm417 = vcmp.ge.f32.partialorder %v339, 0.0
    %vm418 = vcmp.ge.f32.partialorder %v344, 0.0
    %vm419 = vcmp.ge.f32.partialorder %v349, 0.0
    %vm420 = vcmp.ge.f32.partialorder %v354, 0.0
    %vm421 = vcmp.ge.f32.partialorder %v359, 0.0
    %vm422 = vcmp.ge.f32.partialorder %v364, 0.0
    %vm423 = vcmp.ge.f32.partialorder %v369, 0.0
    %vm424 = vcmp.ge.f32.partialorder %v374, 0.0
    %vm425 = vcmp.ge.f32.partialorder %v379, 0.0
    %vm426 = vcmp.ge.f32.partialorder %v384, 0.0
    %vm427 = vcmp.ge.f32.partialorder %v389, 0.0
    %vm428 = vcmp.ge.f32.partialorder %v394, 0.0
    %vm429 = vcmp.ge.f32.partialorder %v399, 0.0
    %vm430 = vcmp.ge.f32.partialorder %v404, 0.0
    %vm431 = vcmp.ge.f32.partialorder %v409, 0.0
    %vm432 = vcmp.ge.f32.partialorder %v414, 0.0
    %v433 = vmul.f32 %v339, 0.2
    %v434 = vmul.f32 %v344, 0.2
    %v435 = vmul.f32 %v349, 0.2
    %v436 = vmul.f32 %v354, 0.2
    %v437 = vmul.f32 %v359, 0.2
    %v438 = vmul.f32 %v364, 0.2
    %v439 = vmul.f32 %v369, 0.2
    %v440 = vmul.f32 %v374, 0.2
    %v441 = vmul.f32 %v379, 0.2
    %v442 = vmul.f32 %v384, 0.2
    %v443 = vmul.f32 %v389, 0.2
    %v444 = vmul.f32 %v394, 0.2
    %v445 = vmul.f32 %v399, 0.2
    %v446 = vmul.f32 %v404, 0.2
    %v447 = vmul.f32 %v409, 0.2
    %v448 = vmul.f32 %v414, 0.2
    %v449 = vsel %vm417, %v339, %v433
    %v450 = vsel %vm418, %v344, %v434
    %v451 = vsel %vm419, %v349, %v435
    %v452 = vsel %vm420, %v354, %v436
    %v453 = vsel %vm421, %v359, %v437
    %v454 = vsel %vm422, %v364, %v438
    %v455 = vsel %vm423, %v369, %v439
    %v456 = vsel %vm424, %v374, %v440
    %v457 = vsel %vm425, %v379, %v441
    %v458 = vsel %vm426, %v384, %v442
    %v459 = vsel %vm427, %v389, %v443
    %v460 = vsel %vm428, %v394, %v444
    %v461 = vsel %vm429, %v399, %v445
    %v462 = vsel %vm430, %v404, %v446
    %v463 = vsel %vm431, %v409, %v447
    %v464 = vsel %vm432, %v414, %v448
    %v465 = vmul.f32 %v449, %v449
    %v466 = vmul.f32 %v450, %v450
    %v467 = vmul.f32 %v451, %v451
    %v468 = vmul.f32 %v452, %v452
    %v469 = vmul.f32 %v453, %v453
    %v470 = vmul.f32 %v454, %v454
    %v471 = vmul.f32 %v455, %v455
    %v472 = vmul.f32 %v456, %v456
    %v473 = vmul.f32 %v457, %v457
    %v474 = vmul.f32 %v458, %v458
    %v475 = vmul.f32 %v459, %v459
    %v476 = vmul.f32 %v460, %v460
    %v477 = vmul.f32 %v461, %v461
    %v478 = vmul.f32 %v462, %v462
    %v479 = vmul.f32 %v463, %v463
    %v480 = vmul.f32 %v464, %v464
    %481 = vadd.xlane.f32.xlu0 %v465
    %v482 = vpop.xlane.xlu0 %481
    %483 = vadd.xlane.f32.xlu0 %v466
    %v484 = vpop.xlane.xlu0 %483
    %485 = vadd.xlane.f32.xlu0 %v467
    %v486 = vpop.xlane.xlu0 %485
    %487 = vadd.xlane.f32.xlu0 %v468
    %v488 = vpop.xlane.xlu0 %487
    %489 = vadd.xlane.f32.xlu0 %v469
    %v490 = vpop.xlane.xlu0 %489
    %491 = vadd.xlane.f32.xlu0 %v470
    %v492 = vpop.xlane.xlu0 %491
    %493 = vadd.xlane.f32.xlu0 %v471
    %v494 = vpop.xlane.xlu0 %493
    %495 = vadd.xlane.f32.xlu0 %v472
    %v496 = vpop.xlane.xlu0 %495
    %497 = vadd.xlane.f32.xlu0 %v473
    %v498 = vpop.xlane.xlu0 %497
    %499 = vadd.xlane.f32.xlu0 %v474
    %v500 = vpop.xlane.xlu0 %499
    %501 = vadd.xlane.f32.xlu0 %v475
    %v502 = vpop.xlane.xlu0 %501
    %503 = vadd.xlane.f32.xlu0 %v476
    %v504 = vpop.xlane.xlu0 %503
    %505 = vadd.xlane.f32.xlu0 %v477
    %v506 = vpop.xlane.xlu0 %505
    %507 = vadd.xlane.f32.xlu0 %v478
    %v508 = vpop.xlane.xlu0 %507
    %509 = vadd.xlane.f32.xlu0 %v479
    %v510 = vpop.xlane.xlu0 %509
    %511 = vadd.xlane.f32.xlu0 %v480
    %v512 = vpop.xlane.xlu0 %511
    %v513 = vmax.f32 %v482, 1e-24
    %v514 = vmax.f32 %v484, 1e-24
    %v515 = vmax.f32 %v486, 1e-24
    %v516 = vmax.f32 %v488, 1e-24
    %v517 = vmax.f32 %v490, 1e-24
    %v518 = vmax.f32 %v492, 1e-24
    %v519 = vmax.f32 %v494, 1e-24
    %v520 = vmax.f32 %v496, 1e-24
    %v521 = vmax.f32 %v498, 1e-24
    %v522 = vmax.f32 %v500, 1e-24
    %v523 = vmax.f32 %v502, 1e-24
    %v524 = vmax.f32 %v504, 1e-24
    %v525 = vmax.f32 %v506, 1e-24
    %v526 = vmax.f32 %v508, 1e-24
    %v527 = vmax.f32 %v510, 1e-24
    %v528 = vmax.f32 %v512, 1e-24
    %v529 = vrsqrt.pop %v513
    %v530 = vrsqrt.pop %v514
    %v531 = vrsqrt.pop %v515
    %v532 = vrsqrt.pop %v516
    %v533 = vrsqrt.pop %v517
    %v534 = vrsqrt.pop %v518
    %v535 = vrsqrt.pop %v519
    %v536 = vrsqrt.pop %v520
    %v537 = vrsqrt.pop %v521
    %v538 = vrsqrt.pop %v522
    %v539 = vrsqrt.pop %v523
    %v540 = vrsqrt.pop %v524
    %v541 = vrsqrt.pop %v525
    %v542 = vrsqrt.pop %v526
    %v543 = vrsqrt.pop %v527
    %v544 = vrsqrt.pop %v528
    %v545 = vmul.f32 %v449, %v529
    %v546 = vmul.f32 %v450, %v530
    %v547 = vmul.f32 %v451, %v531
    %v548 = vmul.f32 %v452, %v532
    %v549 = vmul.f32 %v453, %v533
    %v550 = vmul.f32 %v454, %v534
    %v551 = vmul.f32 %v455, %v535
    %v552 = vmul.f32 %v456, %v536
    %v553 = vmul.f32 %v457, %v537
    %v554 = vmul.f32 %v458, %v538
    %v555 = vmul.f32 %v459, %v539
    %v556 = vmul.f32 %v460, %v540
    %v557 = vmul.f32 %v461, %v541
    %v558 = vmul.f32 %v462, %v542
    %v559 = vmul.f32 %v463, %v543
    %v560 = vmul.f32 %v464, %v544
    %561 = vst [vmem:[%s4] sm:$0xff] %v545
    %562 = vst [vmem:[%s4 + $0x10] sm:$0xff] %v546
    %563 = vst [vmem:[%s4 + $0x20] sm:$0xff] %v547
    %564 = vst [vmem:[%s4 + $0x30] sm:$0xff] %v548
    %565 = vst [vmem:[%s4 + $0x40] sm:$0xff] %v549
    %566 = vst [vmem:[%s4 + $0x50] sm:$0xff] %v550
    %567 = vst [vmem:[%s4 + $0x60] sm:$0xff] %v551
    %568 = vst [vmem:[%s4 + $0x70] sm:$0xff] %v552
    %569 = vst [vmem:[%s4 + $0x80] sm:$0xff] %v553
    %570 = vst [vmem:[%s4 + $0x90] sm:$0xff] %v554
    %571 = vst [vmem:[%s4 + $0xa0] sm:$0xff] %v555
    %572 = vst [vmem:[%s4 + $0xb0] sm:$0xff] %v556
    %573 = vst [vmem:[%s4 + $0xc0] sm:$0xff] %v557
    %574 = vst [vmem:[%s4 + $0xd0] sm:$0xff] %v558
    %575 = vst [vmem:[%s4 + $0xe0] sm:$0xff] %v559
    %576 = vst [vmem:[%s4 + $0xf0] sm:$0xff] %v560
    %s577 = scalar_lea.vmem %s2, 128
    %v578 = vld [vmem:[%s577] sm:$0xff]
    %v579 = vld [vmem:[%s577 + $0x8] sm:$0xff]
    %v580 = vld [vmem:[%s577 + $0x10] sm:$0xff]
    %v581 = vld [vmem:[%s577 + $0x18] sm:$0xff]
    %v582 = vld [vmem:[%s577 + $0x20] sm:$0xff]
    %v583 = vld [vmem:[%s577 + $0x28] sm:$0xff]
    %v584 = vld [vmem:[%s577 + $0x30] sm:$0xff]
    %v585 = vld [vmem:[%s577 + $0x38] sm:$0xff]
    %v586 = vld [vmem:[%s577 + $0x40] sm:$0xff]
    %v587 = vld [vmem:[%s577 + $0x48] sm:$0xff]
    %v588 = vld [vmem:[%s577 + $0x50] sm:$0xff]
    %v589 = vld [vmem:[%s577 + $0x58] sm:$0xff]
    %v590 = vld [vmem:[%s577 + $0x60] sm:$0xff]
    %v591 = vld [vmem:[%s577 + $0x68] sm:$0xff]
    %v592 = vld [vmem:[%s577 + $0x70] sm:$0xff]
    %v593 = vld [vmem:[%s577 + $0x78] sm:$0xff]
    %s594 = scalar_lea.vmem %s3, 1
    %v595 = vld [vmem:[%s594] sm:$0x1]
    %v597 = vlaneseq
    %v598 = vshrl.u32 %v597, 7
    %v599 = vsub.s32 0, %v598
    %v600 = vrot.slane %v595, %v599
    %602 = vmatprep.subr.mxu0 0.0
    %603 = vmatpush1.msra.mxu0 %v593
    %604 = vmatprep.subr.mxu0 0.0
    %605 = vmatpush1.msra.mxu0 %v592
    %606 = vmatprep.subr.mxu0 0.0
    %607 = vmatpush1.msra.mxu0 %v591
    %608 = vmatprep.subr.mxu0 0.0
    %609 = vmatpush1.msra.mxu0 %v590
    %610 = vmatprep.subr.mxu0 0.0
    %611 = vmatpush1.msra.mxu0 %v589
    %612 = vmatprep.subr.mxu0 0.0
    %613 = vmatpush1.msra.mxu0 %v588
    %614 = vmatprep.subr.mxu0 0.0
    %615 = vmatpush1.msra.mxu0 %v587
    %616 = vmatprep.subr.mxu0 0.0
    %617 = vmatpush1.msra.mxu0 %v586
    %618 = vmatprep.subr.mxu0 0.0
    %619 = vmatpush1.msra.mxu0 %v585
    %620 = vmatprep.subr.mxu0 0.0
    %621 = vmatpush1.msra.mxu0 %v584
    %622 = vmatprep.subr.mxu0 0.0
    %623 = vmatpush1.msra.mxu0 %v583
    %624 = vmatprep.subr.mxu0 0.0
    %625 = vmatpush1.msra.mxu0 %v582
    %626 = vmatprep.subr.mxu0 0.0
    %627 = vmatpush1.msra.mxu0 %v581
    %628 = vmatprep.subr.mxu0 0.0
    %629 = vmatpush1.msra.mxu0 %v580
    %630 = vmatprep.subr.mxu0 0.0
    %631 = vmatpush1.msra.mxu0 %v579
    %632 = vmatprep.subr.mxu0 0.0
    %633 = vmatpush1.msra.mxu0 %v578
    %634 = vmatprep.subr.mxu0 0.0
    %635 = vmatpush2.msra.mxu0 0.0
    %636 = vmatprep.subr.mxu0 0.0
    %637 = vmatpush2.msra.mxu0 0.0
    %638 = vmatprep.subr.mxu0 0.0
    %639 = vmatpush2.msra.mxu0 0.0
    %640 = vmatprep.subr.mxu0 0.0
    %641 = vmatpush2.msra.mxu0 0.0
    %642 = vmatprep.subr.mxu0 0.0
    %643 = vmatpush2.msra.mxu0 0.0
    %644 = vmatprep.subr.mxu0 0.0
    %645 = vmatpush2.msra.mxu0 0.0
    %646 = vmatprep.subr.mxu0 0.0
    %647 = vmatpush2.msra.mxu0 0.0
    %648 = vmatprep.subr.mxu0 0.0
    %649 = vmatpush2.msra.mxu0 0.0
    %650 = vmatprep.subr.mxu0 0.0
    %651 = vmatpush2.msra.mxu0 0.0
    %652 = vmatprep.subr.mxu0 0.0
    %653 = vmatpush2.msra.mxu0 0.0
    %654 = vmatprep.subr.mxu0 0.0
    %655 = vmatpush2.msra.mxu0 0.0
    %656 = vmatprep.subr.mxu0 0.0
    %657 = vmatpush2.msra.mxu0 0.0
    %658 = vmatprep.subr.mxu0 0.0
    %659 = vmatpush2.msra.mxu0 0.0
    %660 = vmatprep.subr.mxu0 0.0
    %661 = vmatpush2.msra.mxu0 0.0
    %662 = vmatprep.subr.mxu0 0.0
    %663 = vmatpush2.msra.mxu0 0.0
    %664 = vmatprep.subr.mxu0 0.0
    %665 = vmatpush2.msra.mxu0 0.0
    %666 = vmatprep.mubr.f32.mxu0 0.0
    %667 = vmatmul.mubr.f32.gmra.mxu0 %v233
    %v668 = vpop.f32.mrf.mxu0
    %v669 = vadd.f32 %v600, %v668
    %v670 = vpop.f32.mrf.mxu0
    %671 = vmatprep.mubr.f32.mxu0 0.0
    %672 = vmatmul.mubr.f32.gmra.mxu0 %v234
    %v673 = vpop.f32.mrf.mxu0
    %v674 = vadd.f32 %v600, %v673
    %v675 = vpop.f32.mrf.mxu0
    %676 = vmatprep.mubr.f32.mxu0 0.0
    %677 = vmatmul.mubr.f32.gmra.mxu0 %v235
    %v678 = vpop.f32.mrf.mxu0
    %v679 = vadd.f32 %v600, %v678
    %v680 = vpop.f32.mrf.mxu0
    %681 = vmatprep.mubr.f32.mxu0 0.0
    %682 = vmatmul.mubr.f32.gmra.mxu0 %v236
    %v683 = vpop.f32.mrf.mxu0
    %v684 = vadd.f32 %v600, %v683
    %v685 = vpop.f32.mrf.mxu0
    %686 = vmatprep.mubr.f32.mxu0 0.0
    %687 = vmatmul.mubr.f32.gmra.mxu0 %v237
    %v688 = vpop.f32.mrf.mxu0
    %v689 = vadd.f32 %v600, %v688
    %v690 = vpop.f32.mrf.mxu0
    %691 = vmatprep.mubr.f32.mxu0 0.0
    %692 = vmatmul.mubr.f32.gmra.mxu0 %v238
    %v693 = vpop.f32.mrf.mxu0
    %v694 = vadd.f32 %v600, %v693
    %v695 = vpop.f32.mrf.mxu0
    %696 = vmatprep.mubr.f32.mxu0 0.0
    %697 = vmatmul.mubr.f32.gmra.mxu0 %v239
    %v698 = vpop.f32.mrf.mxu0
    %v699 = vadd.f32 %v600, %v698
    %v700 = vpop.f32.mrf.mxu0
    %701 = vmatprep.mubr.f32.mxu0 0.0
    %702 = vmatmul.mubr.f32.gmra.mxu0 %v240
    %v703 = vpop.f32.mrf.mxu0
    %v704 = vadd.f32 %v600, %v703
    %v705 = vpop.f32.mrf.mxu0
    %706 = vmatprep.mubr.f32.mxu0 0.0
    %707 = vmatmul.mubr.f32.gmra.mxu0 %v241
    %v708 = vpop.f32.mrf.mxu0
    %v709 = vadd.f32 %v600, %v708
    %v710 = vpop.f32.mrf.mxu0
    %711 = vmatprep.mubr.f32.mxu0 0.0
    %712 = vmatmul.mubr.f32.gmra.mxu0 %v242
    %v713 = vpop.f32.mrf.mxu0
    %v714 = vadd.f32 %v600, %v713
    %v715 = vpop.f32.mrf.mxu0
    %716 = vmatprep.mubr.f32.mxu0 0.0
    %717 = vmatmul.mubr.f32.gmra.mxu0 %v243
    %v718 = vpop.f32.mrf.mxu0
    %v719 = vadd.f32 %v600, %v718
    %v720 = vpop.f32.mrf.mxu0
    %721 = vmatprep.mubr.f32.mxu0 0.0
    %722 = vmatmul.mubr.f32.gmra.mxu0 %v244
    %v723 = vpop.f32.mrf.mxu0
    %v724 = vadd.f32 %v600, %v723
    %v725 = vpop.f32.mrf.mxu0
    %726 = vmatprep.mubr.f32.mxu0 0.0
    %727 = vmatmul.mubr.f32.gmra.mxu0 %v245
    %v728 = vpop.f32.mrf.mxu0
    %v729 = vadd.f32 %v600, %v728
    %v730 = vpop.f32.mrf.mxu0
    %731 = vmatprep.mubr.f32.mxu0 0.0
    %732 = vmatmul.mubr.f32.gmra.mxu0 %v246
    %v733 = vpop.f32.mrf.mxu0
    %v734 = vadd.f32 %v600, %v733
    %v735 = vpop.f32.mrf.mxu0
    %736 = vmatprep.mubr.f32.mxu0 0.0
    %737 = vmatmul.mubr.f32.gmra.mxu0 %v247
    %v738 = vpop.f32.mrf.mxu0
    %v739 = vadd.f32 %v600, %v738
    %v740 = vpop.f32.mrf.mxu0
    %741 = vmatprep.mubr.f32.mxu0 0.0
    %742 = vmatmul.mubr.f32.gmra.mxu0 %v248
    %v743 = vpop.f32.mrf.mxu0
    %v744 = vadd.f32 %v600, %v743
    %v745 = vpop.f32.mrf.mxu0
    %746 = vdwg.mxu0
    %vm747 = vcmp.ge.f32.partialorder %v669, 0.0
    %vm748 = vcmp.ge.f32.partialorder %v674, 0.0
    %vm749 = vcmp.ge.f32.partialorder %v679, 0.0
    %vm750 = vcmp.ge.f32.partialorder %v684, 0.0
    %vm751 = vcmp.ge.f32.partialorder %v689, 0.0
    %vm752 = vcmp.ge.f32.partialorder %v694, 0.0
    %vm753 = vcmp.ge.f32.partialorder %v699, 0.0
    %vm754 = vcmp.ge.f32.partialorder %v704, 0.0
    %vm755 = vcmp.ge.f32.partialorder %v709, 0.0
    %vm756 = vcmp.ge.f32.partialorder %v714, 0.0
    %vm757 = vcmp.ge.f32.partialorder %v719, 0.0
    %vm758 = vcmp.ge.f32.partialorder %v724, 0.0
    %vm759 = vcmp.ge.f32.partialorder %v729, 0.0
    %vm760 = vcmp.ge.f32.partialorder %v734, 0.0
    %vm761 = vcmp.ge.f32.partialorder %v739, 0.0
    %vm762 = vcmp.ge.f32.partialorder %v744, 0.0
    %v763 = vmul.f32 %v669, 0.2
    %v764 = vmul.f32 %v674, 0.2
    %v765 = vmul.f32 %v679, 0.2
    %v766 = vmul.f32 %v684, 0.2
    %v767 = vmul.f32 %v689, 0.2
    %v768 = vmul.f32 %v694, 0.2
    %v769 = vmul.f32 %v699, 0.2
    %v770 = vmul.f32 %v704, 0.2
    %v771 = vmul.f32 %v709, 0.2
    %v772 = vmul.f32 %v714, 0.2
    %v773 = vmul.f32 %v719, 0.2
    %v774 = vmul.f32 %v724, 0.2
    %v775 = vmul.f32 %v729, 0.2
    %v776 = vmul.f32 %v734, 0.2
    %v777 = vmul.f32 %v739, 0.2
    %v778 = vmul.f32 %v744, 0.2
    %v779 = vsel %vm747, %v669, %v763
    %v780 = vsel %vm748, %v674, %v764
    %v781 = vsel %vm749, %v679, %v765
    %v782 = vsel %vm750, %v684, %v766
    %v783 = vsel %vm751, %v689, %v767
    %v784 = vsel %vm752, %v694, %v768
    %v785 = vsel %vm753, %v699, %v769
    %v786 = vsel %vm754, %v704, %v770
    %v787 = vsel %vm755, %v709, %v771
    %v788 = vsel %vm756, %v714, %v772
    %v789 = vsel %vm757, %v719, %v773
    %v790 = vsel %vm758, %v724, %v774
    %v791 = vsel %vm759, %v729, %v775
    %v792 = vsel %vm760, %v734, %v776
    %v793 = vsel %vm761, %v739, %v777
    %v794 = vsel %vm762, %v744, %v778
    %v795 = vmul.f32 %v779, %v779
    %v796 = vmul.f32 %v780, %v780
    %v797 = vmul.f32 %v781, %v781
    %v798 = vmul.f32 %v782, %v782
    %v799 = vmul.f32 %v783, %v783
    %v800 = vmul.f32 %v784, %v784
    %v801 = vmul.f32 %v785, %v785
    %v802 = vmul.f32 %v786, %v786
    %v803 = vmul.f32 %v787, %v787
    %v804 = vmul.f32 %v788, %v788
    %v805 = vmul.f32 %v789, %v789
    %v806 = vmul.f32 %v790, %v790
    %v807 = vmul.f32 %v791, %v791
    %v808 = vmul.f32 %v792, %v792
    %v809 = vmul.f32 %v793, %v793
    %v810 = vmul.f32 %v794, %v794
    %811 = vadd.xlane.f32.xlu0 %v795
    %v812 = vpop.xlane.xlu0 %811
    %813 = vadd.xlane.f32.xlu0 %v796
    %v814 = vpop.xlane.xlu0 %813
    %815 = vadd.xlane.f32.xlu0 %v797
    %v816 = vpop.xlane.xlu0 %815
    %817 = vadd.xlane.f32.xlu0 %v798
    %v818 = vpop.xlane.xlu0 %817
    %819 = vadd.xlane.f32.xlu0 %v799
    %v820 = vpop.xlane.xlu0 %819
    %821 = vadd.xlane.f32.xlu0 %v800
    %v822 = vpop.xlane.xlu0 %821
    %823 = vadd.xlane.f32.xlu0 %v801
    %v824 = vpop.xlane.xlu0 %823
    %825 = vadd.xlane.f32.xlu0 %v802
    %v826 = vpop.xlane.xlu0 %825
    %827 = vadd.xlane.f32.xlu0 %v803
    %v828 = vpop.xlane.xlu0 %827
    %829 = vadd.xlane.f32.xlu0 %v804
    %v830 = vpop.xlane.xlu0 %829
    %831 = vadd.xlane.f32.xlu0 %v805
    %v832 = vpop.xlane.xlu0 %831
    %833 = vadd.xlane.f32.xlu0 %v806
    %v834 = vpop.xlane.xlu0 %833
    %835 = vadd.xlane.f32.xlu0 %v807
    %v836 = vpop.xlane.xlu0 %835
    %837 = vadd.xlane.f32.xlu0 %v808
    %v838 = vpop.xlane.xlu0 %837
    %839 = vadd.xlane.f32.xlu0 %v809
    %v840 = vpop.xlane.xlu0 %839
    %841 = vadd.xlane.f32.xlu0 %v810
    %v842 = vpop.xlane.xlu0 %841
    %v843 = vmax.f32 %v812, 1e-24
    %v844 = vmax.f32 %v814, 1e-24
    %v845 = vmax.f32 %v816, 1e-24
    %v846 = vmax.f32 %v818, 1e-24
    %v847 = vmax.f32 %v820, 1e-24
    %v848 = vmax.f32 %v822, 1e-24
    %v849 = vmax.f32 %v824, 1e-24
    %v850 = vmax.f32 %v826, 1e-24
    %v851 = vmax.f32 %v828, 1e-24
    %v852 = vmax.f32 %v830, 1e-24
    %v853 = vmax.f32 %v832, 1e-24
    %v854 = vmax.f32 %v834, 1e-24
    %v855 = vmax.f32 %v836, 1e-24
    %v856 = vmax.f32 %v838, 1e-24
    %v857 = vmax.f32 %v840, 1e-24
    %v858 = vmax.f32 %v842, 1e-24
    %v859 = vrsqrt.pop %v843
    %v860 = vrsqrt.pop %v844
    %v861 = vrsqrt.pop %v845
    %v862 = vrsqrt.pop %v846
    %v863 = vrsqrt.pop %v847
    %v864 = vrsqrt.pop %v848
    %v865 = vrsqrt.pop %v849
    %v866 = vrsqrt.pop %v850
    %v867 = vrsqrt.pop %v851
    %v868 = vrsqrt.pop %v852
    %v869 = vrsqrt.pop %v853
    %v870 = vrsqrt.pop %v854
    %v871 = vrsqrt.pop %v855
    %v872 = vrsqrt.pop %v856
    %v873 = vrsqrt.pop %v857
    %v874 = vrsqrt.pop %v858
    %v875 = vmul.f32 %v779, %v859
    %v876 = vmul.f32 %v780, %v860
    %v877 = vmul.f32 %v781, %v861
    %v878 = vmul.f32 %v782, %v862
    %v879 = vmul.f32 %v783, %v863
    %v880 = vmul.f32 %v784, %v864
    %v881 = vmul.f32 %v785, %v865
    %v882 = vmul.f32 %v786, %v866
    %v883 = vmul.f32 %v787, %v867
    %v884 = vmul.f32 %v788, %v868
    %v885 = vmul.f32 %v789, %v869
    %v886 = vmul.f32 %v790, %v870
    %v887 = vmul.f32 %v791, %v871
    %v888 = vmul.f32 %v792, %v872
    %v889 = vmul.f32 %v793, %v873
    %v890 = vmul.f32 %v794, %v874
    %891 = vst [vmem:[%s4 + $0x8] sm:$0xff] %v875
    %892 = vst [vmem:[%s4 + $0x18] sm:$0xff] %v876
    %893 = vst [vmem:[%s4 + $0x28] sm:$0xff] %v877
    %894 = vst [vmem:[%s4 + $0x38] sm:$0xff] %v878
    %895 = vst [vmem:[%s4 + $0x48] sm:$0xff] %v879
    %896 = vst [vmem:[%s4 + $0x58] sm:$0xff] %v880
    %897 = vst [vmem:[%s4 + $0x68] sm:$0xff] %v881
    %898 = vst [vmem:[%s4 + $0x78] sm:$0xff] %v882
    %899 = vst [vmem:[%s4 + $0x88] sm:$0xff] %v883
    %900 = vst [vmem:[%s4 + $0x98] sm:$0xff] %v884
    %901 = vst [vmem:[%s4 + $0xa8] sm:$0xff] %v885
    %902 = vst [vmem:[%s4 + $0xb8] sm:$0xff] %v886
    %903 = vst [vmem:[%s4 + $0xc8] sm:$0xff] %v887
    %904 = vst [vmem:[%s4 + $0xd8] sm:$0xff] %v888
    %905 = vst [vmem:[%s4 + $0xe8] sm:$0xff] %v889
    %906 = vst [vmem:[%s4 + $0xf8] sm:$0xff] %v890
  $region25: #{_lambda_.4} parent=0 // pred_fallthru
    _
  // Predicated region
  $region26: #{_lambda_.4} parent=0 // pred_check
    _
  $region27: #{_lambda_.4} parent=0 // pred_check_branch
    %908 = sbr.rel (0) target = $region29
  $region28: #{_lambda_.4} parent=0 // pred_region
    _
  $region29: #{_lambda_.4} parent=0 // pred_fallthru
    _
  // Predicated region
  $region30: #{_lambda_.4} parent=0 // pred_check
    _
  $region31: #{_lambda_.4} parent=0 // pred_check_branch
    %910 = sbr.rel (0) target = $region33
  $region32: #{_lambda_.4} parent=0 // pred_region
    _
  $region33: #{_lambda_.4} parent=0 // pred_fallthru
    _

</llo_original>
